<compile_context>
chip_gen: v6e
topology: v6e:2x2x1
jax: 0.10.0
libtpu: 0.0.40
codegen_flags: <defaults>
</compile_context>

<pallas_src>
import functools

import jax
import jax.numpy as jnp
from jax.experimental import pallas as pl
from jax.experimental.pallas import tpu as pltpu

EPS = 1e-5
LANES = 128   # lane-dense output-channel width for the layer-2 result
K1_PAD = 16   # layer-1 contraction: 9 real taps zero-padded to a sublane-friendly 16


def _make_fused_kernel(rows_b, rows_h, stage_rows, kh, kw, c1, ow_pad):
    """conv1+ReLU+BN1 -> VMEM -> (kj,cin)-packed conv2+ReLU+BN2, one batch element."""
    stage_tail = stage_rows - rows_b

    def kernel(a1_ref, w1_ref, p1_ref, w2_ref, p2_ref, o_ref, y1s_ref, h1_ref):
        # ---- Layer 1: conv as a single matmul (bf16 x bf16 -> f32 accum) --------
        y1 = jnp.dot(a1_ref[...], w1_ref[...], preferred_element_type=jnp.float32)
        y1 = jnp.maximum(y1 + p1_ref[0:1, :], 0.0)            # bias + ReLU
        y1 = y1 * p1_ref[1:2, :] + p1_ref[2:3, :]              # folded BatchNorm

        # Stage the activation in VMEM with a zeroed tail so the shifted reads
        # below stay in-bounds (tail rows only feed output rows that are sliced
        # off in the wrapper).
        y1s_ref[pl.ds(0, rows_b), :] = y1
        y1s_ref[pl.ds(rows_b, stage_tail), :] = jnp.zeros(
            (stage_tail, c1), jnp.float32)

        # ---- Pack the kw column-shifts along lanes: h1[q, kj*c1 + c] = y1[q+kj, c].
        # With the spatial row stride padded to ow_pad (16), every layer-2 LHS
        # read then starts at ki*ow_pad — a multiple of 16, i.e. sublane aligned.
        cols = [y1s_ref[pl.ds(kj, rows_h), :] for kj in range(kw)]
        h1_ref[...] = jnp.concatenate(cols, axis=1).astype(jnp.bfloat16)

        # ---- Layer 2: kh aligned matmuls over the packed contraction (K = kw*c1).
        acc = None
        for ki in range(kh):
            part = jnp.dot(h1_ref[pl.ds(ki * ow_pad, rows_b), :], w2_ref[ki],
                           preferred_element_type=jnp.float32)
            acc = part if acc is None else acc + part
        y2 = jnp.maximum(acc + p2_ref[0:1, :], 0.0)            # bias + ReLU
        o_ref[...] = (y2 * p2_ref[1:2, :] + p2_ref[2:3, :]).astype(o_ref.dtype)

    return kernel


def _fused_cnn_call(a1, w1p, p1, w2p, p2, *, B, rows_b, rows_h, stage_rows,
                    kh, kw, c1, ow_pad):
    k2 = kw * c1
    kernel = _make_fused_kernel(rows_b, rows_h, stage_rows, kh, kw, c1, ow_pad)
    return pl.pallas_call(
        kernel,
        out_shape=jax.ShapeDtypeStruct((B * rows_b, LANES), jnp.bfloat16),
        grid=(B,),   # one step per batch element: megacore-parallel on v7x,
                     # DMA/compute overlap via double-buffering on v5e/v6e.
        in_specs=[
            pl.BlockSpec((rows_b, K1_PAD), lambda b: (b, 0)),    # layer-1 patches
            pl.BlockSpec((K1_PAD, c1), lambda b: (0, 0)),        # W1 (compact)
            pl.BlockSpec((8, c1), lambda b: (0, 0)),             # bias/scale/shift 1
            pl.BlockSpec((kh, k2, LANES), lambda b: (0, 0, 0)),  # W2 (kj,cin)-packed
            pl.BlockSpec((8, LANES), lambda b: (0, 0)),          # bias/scale/shift 2
        ],
        out_specs=pl.BlockSpec((rows_b, LANES), lambda b: (b, 0)),
        scratch_shapes=[
            pltpu.VMEM((stage_rows, c1), jnp.float32),   # staged layer-1 activation
            pltpu.VMEM((rows_h, k2), jnp.bfloat16),      # lane-packed layer-2 LHS
        ],
        compiler_params=pltpu.CompilerParams(
            dimension_semantics=("parallel",)),
    )(a1, w1p, p1, w2p, p2)


def _pack_params(bias, gamma, beta, mean, var, width):
    """Fold BN into scale/shift; pack [bias; scale; shift] into one (8, width) block."""
    n = bias.shape[0]
    scale = gamma * jax.lax.rsqrt(var + EPS)
    shift = beta - mean * scale
    p = jnp.zeros((8, width), jnp.float32)
    p = p.at[0, :n].set(bias.astype(jnp.float32))
    p = p.at[1, :n].set(scale.astype(jnp.float32))
    p = p.at[2, :n].set(shift.astype(jnp.float32))
    return p


def cnn_forward(x_nchw, params):
    """Forward pass of the 2-layer CNN. x_nchw: (B, 1, H, W) float32."""
    assert len(params) == 2, "fused kernel is specialized to the 2-layer spec"
    (w1, b1, g1, bt1, mu1, v1), (w2, b2, g2, bt2, mu2, v2) = params
    kh, kw, cin, c1 = w1.shape
    _, _, _, c2 = w2.shape

    x = jnp.transpose(x_nchw, (0, 2, 3, 1)).astype(jnp.float32)   # NCHW -> NHWC
    B, H, W, _ = x.shape
    oh1, ow1 = H - kh + 1, W - kw + 1              # layer-1 output grid (14x14)
    oh2, ow2 = oh1 - kh + 1, ow1 - kw + 1          # layer-2 output grid (12x12)
    ow_pad = ((ow1 + 7) // 8) * 8                  # 14 -> 16: aligned row stride
    rows_b = oh1 * ow_pad                          # rows per batch element (224)
    rows_h = rows_b + (kh - 1) * ow_pad            # packed LHS rows incl. tail (256)
    stage_rows = rows_h + 8                        # staging-buffer rows (264)
    k1 = kh * kw * cin
    assert rows_b % 16 == 0 and k1 <= K1_PAD and kw * c1 <= LANES and c2 <= LANES

    # Layer-1 im2col with the padded row layout; K compact (9 -> 16), bf16.
    taps = [x[:, i:i + oh1, j:j + ow1, :] for i in range(kh) for j in range(kw)]
    a1 = jnp.stack(taps, axis=3).reshape(B, oh1, ow1, k1)
    a1 = jnp.pad(a1, ((0, 0), (0, 0), (0, ow_pad - ow1), (0, K1_PAD - k1)))
    a1 = a1.reshape(B * rows_b, K1_PAD).astype(jnp.bfloat16)

    # Compact bf16 weights.  W2 is packed as (ki, kj*c1 + cin, cout): a straight
    # reshape of the HWIO weight gives exactly that order; only cout is padded.
    w1p = jnp.pad(w1.reshape(k1, c1), ((0, K1_PAD - k1), (0, 0))).astype(jnp.bfloat16)
    w2p = jnp.pad(w2.reshape(kh, kw * c1, c2),
                  ((0, 0), (0, 0), (0, LANES - c2))).astype(jnp.bfloat16)
    p1 = _pack_params(b1, g1, bt1, mu1, v1, c1)
    p2 = _pack_params(b2, g2, bt2, mu2, v2, LANES)

    out = _fused_cnn_call(a1, w1p, p1, w2p, p2, B=B, rows_b=rows_b, rows_h=rows_h,
                          stage_rows=stage_rows, kh=kh, kw=kw, c1=c1, ow_pad=ow_pad)

    # Keep the valid 12x12 grid / real channels; flatten in PyTorch NCHW order.
    y = out.reshape(B, oh1, ow_pad, LANES)[:, :oh2, :ow2, :c2]
    y = jnp.transpose(y, (0, 3, 1, 2)).astype(jnp.float32)        # NHWC -> NCHW
    return y.reshape(B, -1)


def init_params(key):
    """Deterministic init for Conv2d(1,16,3)+BN(16), Conv2d(16,16,3)+BN(16)."""
    layers = [(1, 16), (16, 16)]
    params = []
    for (cin, cout) in layers:
        key, kw_, kb_, kg_, kbt_, km_, kv_ = jax.random.split(key, 7)
        fan_in = cin * 3 * 3
        bound = 1.0 / jnp.sqrt(fan_in)
        w = jax.random.uniform(kw_, (3, 3, cin, cout), jnp.float32, -bound, bound)
        b = jax.random.uniform(kb_, (cout,), jnp.float32, -bound, bound)
        gamma = jax.random.uniform(kg_, (cout,), jnp.float32, 0.5, 1.5)
        beta = jax.random.uniform(kbt_, (cout,), jnp.float32, -0.5, 0.5)
        mean = jax.random.uniform(km_, (cout,), jnp.float32, -0.5, 0.5)
        var = jax.random.uniform(kv_, (cout,), jnp.float32, 0.5, 1.5)
        params.append((w, b, gamma, beta, mean, var))
    return params


def _reference_forward(x_nchw, params):
    """Pure-JAX reference with the same bf16 MXU-operand casts as the kernel."""
    act = x_nchw.astype(jnp.float32)
    for (w, b, gamma, beta, mean, var) in params:
        w_oihw = jnp.transpose(w, (3, 2, 0, 1))          # HWIO -> OIHW
        y = jax.lax.conv_general_dilated(
            act.astype(jnp.bfloat16), w_oihw.astype(jnp.bfloat16),
            window_strides=(1, 1), padding="VALID",
            dimension_numbers=("NCHW", "OIHW", "NCHW"),
            preferred_element_type=jnp.float32)
        y = jnp.maximum(y + b[None, :, None, None], 0.0)
        scale = gamma * jax.lax.rsqrt(var + EPS)
        shift = beta - mean * scale
        act = y * scale[None, :, None, None] + shift[None, :, None, None]
    act = act.astype(jnp.bfloat16).astype(jnp.float32)
    return act.reshape(act.shape[0], -1)


if __name__ == "__main__":
    key = jax.random.PRNGKey(0)
    key, kx = jax.random.split(key)
    # Small MNIST-like input: batch=2, channels=1 (Layers[0]=1), spatial=16x16.
    x = jax.random.normal(kx, (2, 1, 16, 16), jnp.float32)
    params = init_params(key)

    fwd = jax.jit(functools.partial(cnn_forward, params=params))
    out = jax.block_until_ready(fwd(x))

    ref = _reference_forward(x, params)
    assert out.shape == (2, 16 * 12 * 12), out.shape
    err = float(jnp.max(jnp.abs(out - ref)))
    assert jnp.allclose(out, ref, atol=2e-2, rtol=2e-2), err

    print("KERNEL_OK")
</pallas_src>

<mosaic_0001>
module attributes {stable_mosaic.version = 11 : i64} {
  func.func @kernel(%arg0: i32, %arg1: memref<224x16xbf16, #tpu.memory_space<vmem>>, %arg2: memref<16x16xbf16, #tpu.memory_space<vmem>>, %arg3: memref<8x16xf32, #tpu.memory_space<vmem>>, %arg4: memref<3x48x128xbf16, #tpu.memory_space<vmem>>, %arg5: memref<8x128xf32, #tpu.memory_space<vmem>>, %arg6: memref<224x128xbf16, #tpu.memory_space<vmem>>, %arg7: memref<264x16xf32, #tpu.memory_space<vmem>>, %arg8: memref<256x48xbf16, #tpu.memory_space<vmem>>) attributes {dimension_semantics = [#tpu.dimension_semantics<parallel>], iteration_bounds = array<i64: 2>, scalar_prefetch = 0 : i64, scratch_operands = 2 : i64, tpu.core_type = #tpu.core_type<tc>, window_params = [{transform_indices = @transform_0, window_bounds = array<i64: 224, 16>}, {pipeline_mode = #tpu.pipeline_mode<synchronous>, transform_indices = @transform_1, window_bounds = array<i64: 16, 16>}, {pipeline_mode = #tpu.pipeline_mode<synchronous>, transform_indices = @transform_2, window_bounds = array<i64: 8, 16>}, {pipeline_mode = #tpu.pipeline_mode<synchronous>, transform_indices = @transform_3, window_bounds = array<i64: 3, 48, 128>}, {pipeline_mode = #tpu.pipeline_mode<synchronous>, transform_indices = @transform_4, window_bounds = array<i64: 8, 128>}, {transform_indices = @transform_5, window_bounds = array<i64: 224, 128>}]} {
    %c0 = arith.constant 0 : index
    %c0_0 = arith.constant 0 : index
    %0 = vector.load %arg1[%c0, %c0_0] : memref<224x16xbf16, #tpu.memory_space<vmem>>, vector<224x16xbf16>
    %c0_1 = arith.constant 0 : index
    %c0_2 = arith.constant 0 : index
    %1 = vector.load %arg2[%c0_1, %c0_2] : memref<16x16xbf16, #tpu.memory_space<vmem>>, vector<16x16xbf16>
    %cst = arith.constant dense<0.000000e+00> : vector<224x16xf32>
    %2 = tpu.matmul %0, %1, %cst {dimension_numbers = #tpu.dot_dimension_numbers<[1], [0], [0], [1], [0, 0, 1, 1], [], []>} : vector<224x16xbf16>, vector<16x16xbf16>, vector<224x16xf32> -> vector<224x16xf32>
    %c0_3 = arith.constant 0 : index
    %c0_4 = arith.constant 0 : index
    %3 = vector.load %arg3[%c0_3, %c0_4] : memref<8x16xf32, #tpu.memory_space<vmem>>, vector<1x16xf32>
    %4 = vector.broadcast %3 : vector<1x16xf32> to vector<224x16xf32>
    %5 = arith.addf %2, %4 : vector<224x16xf32>
    %cst_5 = arith.constant 0.000000e+00 : f32
    %6 = vector.broadcast %cst_5 : f32 to vector<224x16xf32>
    %7 = arith.maximumf %5, %6 : vector<224x16xf32>
    %c1 = arith.constant 1 : index
    %c0_6 = arith.constant 0 : index
    %8 = vector.load %arg3[%c1, %c0_6] : memref<8x16xf32, #tpu.memory_space<vmem>>, vector<1x16xf32>
    %9 = vector.broadcast %8 : vector<1x16xf32> to vector<224x16xf32>
    %10 = arith.mulf %7, %9 : vector<224x16xf32>
    %c2 = arith.constant 2 : index
    %c0_7 = arith.constant 0 : index
    %11 = vector.load %arg3[%c2, %c0_7] : memref<8x16xf32, #tpu.memory_space<vmem>>, vector<1x16xf32>
    %12 = vector.broadcast %11 : vector<1x16xf32> to vector<224x16xf32>
    %13 = arith.addf %10, %12 : vector<224x16xf32>
    %c0_8 = arith.constant 0 : index
    %c0_9 = arith.constant 0 : index
    %14 = vector.load %arg7[%c0_8, %c0_9] : memref<264x16xf32, #tpu.memory_space<vmem>>, vector<224x16xf32>
    tpu.vector_store %arg7[%c0_8, %c0_9], %13 {strides = array<i32>} : memref<264x16xf32, #tpu.memory_space<vmem>>, vector<224x16xf32>,
    %cst_10 = arith.constant 0.000000e+00 : f32
    %15 = vector.broadcast %cst_10 : f32 to vector<40x16xf32>
    %c224 = arith.constant 224 : index
    %c0_11 = arith.constant 0 : index
    %16 = vector.load %arg7[%c224, %c0_11] : memref<264x16xf32, #tpu.memory_space<vmem>>, vector<40x16xf32>
    tpu.vector_store %arg7[%c224, %c0_11], %15 {strides = array<i32>} : memref<264x16xf32, #tpu.memory_space<vmem>>, vector<40x16xf32>,
    %c0_12 = arith.constant 0 : index
    %c0_13 = arith.constant 0 : index
    %17 = vector.load %arg7[%c0_12, %c0_13] : memref<264x16xf32, #tpu.memory_space<vmem>>, vector<256x16xf32>
    %c1_14 = arith.constant 1 : index
    %c0_15 = arith.constant 0 : index
    %18 = vector.load %arg7[%c1_14, %c0_15] : memref<264x16xf32, #tpu.memory_space<vmem>>, vector<256x16xf32>
    %c2_16 = arith.constant 2 : index
    %c0_17 = arith.constant 0 : index
    %19 = vector.load %arg7[%c2_16, %c0_17] : memref<264x16xf32, #tpu.memory_space<vmem>>, vector<256x16xf32>
    %20 = tpu.concatenate %17, %18, %19 in 1 : vector<256x16xf32>, vector<256x16xf32>, vector<256x16xf32> -> vector<256x48xf32>
    %21 = arith.truncf %20 : vector<256x48xf32> to vector<256x48xbf16>
    %c0_18 = arith.constant 0 : index
    %c0_19 = arith.constant 0 : index
    %22 = vector.load %arg8[%c0_18, %c0_19] : memref<256x48xbf16, #tpu.memory_space<vmem>>, vector<256x48xbf16>
    tpu.vector_store %arg8[%c0_18, %c0_19], %21 {strides = array<i32>} : memref<256x48xbf16, #tpu.memory_space<vmem>>, vector<256x48xbf16>,
    %c0_20 = arith.constant 0 : index
    %c0_21 = arith.constant 0 : index
    %23 = vector.load %arg8[%c0_20, %c0_21] : memref<256x48xbf16, #tpu.memory_space<vmem>>, vector<224x48xbf16>
    %c0_22 = arith.constant 0 : index
    %c0_23 = arith.constant 0 : index
    %c0_24 = arith.constant 0 : index
    %24 = vector.load %arg4[%c0_22, %c0_23, %c0_24] : memref<3x48x128xbf16, #tpu.memory_space<vmem>>, vector<1x48x128xbf16>
    %25 = vector.shape_cast %24 : vector<1x48x128xbf16> to vector<48x128xbf16>
    %cst_25 = arith.constant dense<0.000000e+00> : vector<224x128xf32>
    %26 = tpu.matmul %23, %25, %cst_25 {dimension_numbers = #tpu.dot_dimension_numbers<[1], [0], [0], [1], [0, 0, 1, 1], [], []>} : vector<224x48xbf16>, vector<48x128xbf16>, vector<224x128xf32> -> vector<224x128xf32>
    %c16 = arith.constant 16 : index
    %c0_26 = arith.constant 0 : index
    %27 = vector.load %arg8[%c16, %c0_26] : memref<256x48xbf16, #tpu.memory_space<vmem>>, vector<224x48xbf16>
    %c1_27 = arith.constant 1 : index
    %c0_28 = arith.constant 0 : index
    %c0_29 = arith.constant 0 : index
    %28 = vector.load %arg4[%c1_27, %c0_28, %c0_29] : memref<3x48x128xbf16, #tpu.memory_space<vmem>>, vector<1x48x128xbf16>
    %29 = vector.shape_cast %28 : vector<1x48x128xbf16> to vector<48x128xbf16>
    %cst_30 = arith.constant dense<0.000000e+00> : vector<224x128xf32>
    %30 = tpu.matmul %27, %29, %cst_30 {dimension_numbers = #tpu.dot_dimension_numbers<[1], [0], [0], [1], [0, 0, 1, 1], [], []>} : vector<224x48xbf16>, vector<48x128xbf16>, vector<224x128xf32> -> vector<224x128xf32>
    %31 = arith.addf %26, %30 : vector<224x128xf32>
    %c32 = arith.constant 32 : index
    %c0_31 = arith.constant 0 : index
    %32 = vector.load %arg8[%c32, %c0_31] : memref<256x48xbf16, #tpu.memory_space<vmem>>, vector<224x48xbf16>
    %c2_32 = arith.constant 2 : index
    %c0_33 = arith.constant 0 : index
    %c0_34 = arith.constant 0 : index
    %33 = vector.load %arg4[%c2_32, %c0_33, %c0_34] : memref<3x48x128xbf16, #tpu.memory_space<vmem>>, vector<1x48x128xbf16>
    %34 = vector.shape_cast %33 : vector<1x48x128xbf16> to vector<48x128xbf16>
    %cst_35 = arith.constant dense<0.000000e+00> : vector<224x128xf32>
    %35 = tpu.matmul %32, %34, %cst_35 {dimension_numbers = #tpu.dot_dimension_numbers<[1], [0], [0], [1], [0, 0, 1, 1], [], []>} : vector<224x48xbf16>, vector<48x128xbf16>, vector<224x128xf32> -> vector<224x128xf32>
    %36 = arith.addf %31, %35 : vector<224x128xf32>
    %c0_36 = arith.constant 0 : index
    %c0_37 = arith.constant 0 : index
    %37 = vector.load %arg5[%c0_36, %c0_37] : memref<8x128xf32, #tpu.memory_space<vmem>>, vector<1x128xf32>
    %38 = vector.broadcast %37 : vector<1x128xf32> to vector<224x128xf32>
    %39 = arith.addf %36, %38 : vector<224x128xf32>
    %cst_38 = arith.constant 0.000000e+00 : f32
    %40 = vector.broadcast %cst_38 : f32 to vector<224x128xf32>
    %41 = arith.maximumf %39, %40 : vector<224x128xf32>
    %c1_39 = arith.constant 1 : index
    %c0_40 = arith.constant 0 : index
    %42 = vector.load %arg5[%c1_39, %c0_40] : memref<8x128xf32, #tpu.memory_space<vmem>>, vector<1x128xf32>
    %43 = vector.broadcast %42 : vector<1x128xf32> to vector<224x128xf32>
    %44 = arith.mulf %41, %43 : vector<224x128xf32>
    %c2_41 = arith.constant 2 : index
    %c0_42 = arith.constant 0 : index
    %45 = vector.load %arg5[%c2_41, %c0_42] : memref<8x128xf32, #tpu.memory_space<vmem>>, vector<1x128xf32>
    %46 = vector.broadcast %45 : vector<1x128xf32> to vector<224x128xf32>
    %47 = arith.addf %44, %46 : vector<224x128xf32>
    %48 = arith.truncf %47 : vector<224x128xf32> to vector<224x128xbf16>
    %c0_43 = arith.constant 0 : index
    %c0_44 = arith.constant 0 : index
    %49 = vector.load %arg6[%c0_43, %c0_44] : memref<224x128xbf16, #tpu.memory_space<vmem>>, vector<224x128xbf16>
    tpu.vector_store %arg6[%c0_43, %c0_44], %48 {strides = array<i32>} : memref<224x128xbf16, #tpu.memory_space<vmem>>, vector<224x128xbf16>,
    return
  }
  func.func @transform_0(%arg0: i32) -> (i32, i32) {
    %c0_i32 = arith.constant 0 : i32
    %c0_i32_0 = arith.constant 0 : i32
    return %arg0, %c0_i32 : i32, i32
  }
  func.func @transform_1(%arg0: i32) -> (i32, i32) {
    %c0_i32 = arith.constant 0 : i32
    %c0_i32_0 = arith.constant 0 : i32
    %c0_i32_1 = arith.constant 0 : i32
    return %c0_i32, %c0_i32_0 : i32, i32
  }
  func.func @transform_2(%arg0: i32) -> (i32, i32) {
    %c0_i32 = arith.constant 0 : i32
    %c0_i32_0 = arith.constant 0 : i32
    %c0_i32_1 = arith.constant 0 : i32
    return %c0_i32, %c0_i32_0 : i32, i32
  }
  func.func @transform_3(%arg0: i32) -> (i32, i32, i32) {
    %c0_i32 = arith.constant 0 : i32
    %c0_i32_0 = arith.constant 0 : i32
    %c0_i32_1 = arith.constant 0 : i32
    %c0_i32_2 = arith.constant 0 : i32
    return %c0_i32, %c0_i32_0, %c0_i32_1 : i32, i32, i32
  }
  func.func @transform_4(%arg0: i32) -> (i32, i32) {
    %c0_i32 = arith.constant 0 : i32
    %c0_i32_0 = arith.constant 0 : i32
    %c0_i32_1 = arith.constant 0 : i32
    return %c0_i32, %c0_i32_0 : i32, i32
  }
  func.func @transform_5(%arg0: i32) -> (i32, i32) {
    %c0_i32 = arith.constant 0 : i32
    %c0_i32_0 = arith.constant 0 : i32
    return %arg0, %c0_i32 : i32, i32
  }
}

</mosaic_0001>

<llo_original>
// kernel: cnn_forward.1
$region0: #{cnn_forward.1}
  #allocation0 [shape = 'u32[]', space=smem, size = 0x4, offset = 0x4, fixed_abs, tag = 'smem constant byte address 0x4 - core index']
  #allocation1 [shape = 'u32[144,128]{1,0:T(1,128)}', space=vmem, size = 0x12000, scoped, tag = 'internal scratch']
  #allocation2 [shape = 'f32[264,16]{1,0:T(8,128)}', space=vmem, size = 0x21000, scoped, tag = 'scratch operand']
  #allocation3 [shape = 'bf16[256,48]{1,0:T(8,128)(2,1)}', space=vmem, size = 0x10000, scoped, tag = 'scratch operand']
  %s0 = inlined_call_operand.vmem [shape: bf16[448,16], index: 0, kind: input, shape index: {}]
  %s1 = inlined_call_operand.vmem [shape: bf16[16,16], index: 1, kind: input, shape index: {}]
  %s2 = inlined_call_operand.vmem [shape: f32[8,16], index: 2, kind: input, shape index: {}]
  %s3 = inlined_call_operand.vmem [shape: bf16[3,48,128], index: 3, kind: input, shape index: {}]
  %s4 = inlined_call_operand.vmem [shape: f32[8,128], index: 4, kind: input, shape index: {}]
  %s5 = inlined_call_operand.vmem [shape: bf16[448,128], index: 5, kind: output, shape index: {}]
  %s6 = sld [smem:[#allocation0]]
  $region53: #{cnn_forward.1} parent=0
    _
  %s8 = ssub.s32 1, %s6
  %s9 = scalar_select 0, %s8, %s6
  loop: start=0, step=1, limit=4
  $region2: #{cnn_forward.1} parent=0 // loop_pre_header
    _
  $region3: #{cnn_forward.1} parent=0 // loop_header
    %s11 = sphi 0, %s15
    %p12 = scmp.ge.s32.totalorder %s11, 4
    %s21 = sphi 0, %s23
    %s24 = sphi 0, %s21
    %s25 = sphi 0, %s24
    %s41 = sphi 0, %s25
    %s45 = sphi 0, %s45
    %s47 = sphi 0, %s45
    %s48 = sphi 0, %s47
    %s62 = sphi 0, %s48
    %s66 = sphi 0, %s66
    %s68 = sphi 0, %s66
    %s69 = sphi 0, %s68
    %s83 = sphi 0, %s69
    %s87 = sphi 0, %s87
    %s89 = sphi 0, %s87
    %s90 = sphi 0, %s89
    %s104 = sphi 0, %s90
    %s108 = sphi 0, %s108
    %s110 = sphi 0, %s108
    %s111 = sphi 0, %s110
    %s125 = sphi 0, %s111
    %s131 = sphi 0, %s133
    %s134 = sphi 0, %s131
    %s135 = sphi 0, %s134
    %s151 = sphi 0, %s135
  $region4: #{cnn_forward.1} parent=0 // loop_header_branch
    %14 = sbr.rel (%p12) target = $region8
  $region5: #{cnn_forward.1} parent=0 // loop_body
    %s16 = ssub.s32 %s11, 1
    %s17 = ssub.s32 %s11, 2
    %s18 = sadd.s32 %s11, 1
    %s19 = ssub.s32 %s11, %s18
    %p20 = scmp.eq.s32.totalorder %s19, 0
    %s22 = sadd.s32 %s21, 1
    %s23 = scalar_select %p20, %s21, %s22
    %p26 = pneg %p20
    %p27 = scmp.eq.s32.totalorder %s11, 1
    %p28 = por %p26, %p27
    %p29 = scmp.ne.s32.totalorder %s21, %s24
    %p30 = scmp.eq.s32.totalorder %s11, 0
    %p31 = por %p29, %p30
    %p32 = scmp.ne.s32.totalorder %s21, %s24
    %p33 = scmp.eq.s32.totalorder %s16, 1
    %p34 = por %p32, %p33
    %p35 = scmp.ne.s32.totalorder %s24, %s25
    %p36 = scmp.eq.s32.totalorder %s16, 0
    %p37 = por %p35, %p36
    %p38 = scmp.ne.s32.totalorder %s24, %s25
    %p39 = scmp.eq.s32.totalorder %s17, 1
    %p40 = por %p38, %p39
    %p42 = scmp.ne.s32.totalorder %s25, %s41
    %p43 = scmp.eq.s32.totalorder %s17, 0
    %p44 = por %p42, %p43
    %s46 = sadd.s32 %s45, 1
    %p49 = scmp.eq.s32.totalorder %s11, 1
    %p50 = scmp.ne.s32.totalorder %s45, %s47
    %p51 = scmp.eq.s32.totalorder %s11, 0
    %p52 = por %p50, %p51
    %p53 = scmp.ne.s32.totalorder %s45, %s47
    %p54 = scmp.eq.s32.totalorder %s16, 1
    %p55 = por %p53, %p54
    %p56 = scmp.ne.s32.totalorder %s47, %s48
    %p57 = scmp.eq.s32.totalorder %s16, 0
    %p58 = por %p56, %p57
    %p59 = scmp.ne.s32.totalorder %s47, %s48
    %p60 = scmp.eq.s32.totalorder %s17, 1
    %p61 = por %p59, %p60
    %p63 = scmp.ne.s32.totalorder %s48, %s62
    %p64 = scmp.eq.s32.totalorder %s17, 0
    %p65 = por %p63, %p64
    %s67 = sadd.s32 %s66, 1
    %p70 = scmp.eq.s32.totalorder %s11, 1
    %p71 = scmp.ne.s32.totalorder %s66, %s68
    %p72 = scmp.eq.s32.totalorder %s11, 0
    %p73 = por %p71, %p72
    %p74 = scmp.ne.s32.totalorder %s66, %s68
    %p75 = scmp.eq.s32.totalorder %s16, 1
    %p76 = por %p74, %p75
    %p77 = scmp.ne.s32.totalorder %s68, %s69
    %p78 = scmp.eq.s32.totalorder %s16, 0
    %p79 = por %p77, %p78
    %p80 = scmp.ne.s32.totalorder %s68, %s69
    %p81 = scmp.eq.s32.totalorder %s17, 1
    %p82 = por %p80, %p81
    %p84 = scmp.ne.s32.totalorder %s69, %s83
    %p85 = scmp.eq.s32.totalorder %s17, 0
    %p86 = por %p84, %p85
    %s88 = sadd.s32 %s87, 1
    %p91 = scmp.eq.s32.totalorder %s11, 1
    %p92 = scmp.ne.s32.totalorder %s87, %s89
    %p93 = scmp.eq.s32.totalorder %s11, 0
    %p94 = por %p92, %p93
    %p95 = scmp.ne.s32.totalorder %s87, %s89
    %p96 = scmp.eq.s32.totalorder %s16, 1
    %p97 = por %p95, %p96
    %p98 = scmp.ne.s32.totalorder %s89, %s90
    %p99 = scmp.eq.s32.totalorder %s16, 0
    %p100 = por %p98, %p99
    %p101 = scmp.ne.s32.totalorder %s89, %s90
    %p102 = scmp.eq.s32.totalorder %s17, 1
    %p103 = por %p101, %p102
    %p105 = scmp.ne.s32.totalorder %s90, %s104
    %p106 = scmp.eq.s32.totalorder %s17, 0
    %p107 = por %p105, %p106
    %s109 = sadd.s32 %s108, 1
    %p112 = scmp.eq.s32.totalorder %s11, 1
    %p113 = scmp.ne.s32.totalorder %s108, %s110
    %p114 = scmp.eq.s32.totalorder %s11, 0
    %p115 = por %p113, %p114
    %p116 = scmp.ne.s32.totalorder %s108, %s110
    %p117 = scmp.eq.s32.totalorder %s16, 1
    %p118 = por %p116, %p117
    %p119 = scmp.ne.s32.totalorder %s110, %s111
    %p120 = scmp.eq.s32.totalorder %s16, 0
    %p121 = por %p119, %p120
    %p122 = scmp.ne.s32.totalorder %s110, %s111
    %p123 = scmp.eq.s32.totalorder %s17, 1
    %p124 = por %p122, %p123
    %p126 = scmp.ne.s32.totalorder %s111, %s125
    %p127 = scmp.eq.s32.totalorder %s17, 0
    %p128 = por %p126, %p127
    %s129 = ssub.s32 %s11, %s18
    %p130 = scmp.eq.s32.totalorder %s129, 0
    %s132 = sadd.s32 %s131, 1
    %s133 = scalar_select %p130, %s131, %s132
    %p136 = pneg %p130
    %p137 = scmp.eq.s32.totalorder %s11, 1
    %p138 = por %p136, %p137
    %p139 = scmp.ne.s32.totalorder %s131, %s134
    %p140 = scmp.eq.s32.totalorder %s11, 0
    %p141 = por %p139, %p140
    %p142 = scmp.ne.s32.totalorder %s131, %s134
    %p143 = scmp.eq.s32.totalorder %s16, 1
    %p144 = por %p142, %p143
    %p145 = scmp.ne.s32.totalorder %s134, %s135
    %p146 = scmp.eq.s32.totalorder %s16, 0
    %p147 = por %p145, %p146
    %p148 = scmp.ne.s32.totalorder %s134, %s135
    %p149 = scmp.eq.s32.totalorder %s17, 1
    %p150 = por %p148, %p149
    %p152 = scmp.ne.s32.totalorder %s135, %s151
    %p153 = scmp.eq.s32.totalorder %s17, 0
    %p154 = por %p152, %p153
    %p155 = scmp.le.s32.totalorder 1, %s11
    %p156 = scmp.lt.s32.totalorder %s11, 3
    %p157 = pnand %p155, %p156
    %p158 = pneg %p157
    // Predicated region
    $region9: #{cnn_forward.1} parent=5 // pred_check
      _
    $region10: #{cnn_forward.1} parent=5 // pred_check_branch
      %160 = sbr.rel (%p157) target = $region12
    $region11: #{cnn_forward.1} parent=5 // pred_region
      %s161 = ssub.s32 %s11, 1
      // Predicated region
      $region13: #{cnn_forward.1} parent=11 // pred_check
        %p162 = pneg %p58
      $region14: #{cnn_forward.1} parent=11 // pred_check_branch
        %164 = sbr.rel (%p162) target = $region16
      $region15: #{cnn_forward.1} parent=11 // pred_region
        _
      $region16: #{cnn_forward.1} parent=11 // pred_fallthru
        _
      // Predicated region
      $region17: #{cnn_forward.1} parent=11 // pred_check
        %p165 = pneg %p79
      $region18: #{cnn_forward.1} parent=11 // pred_check_branch
        %167 = sbr.rel (%p165) target = $region20
      $region19: #{cnn_forward.1} parent=11 // pred_region
        _
      $region20: #{cnn_forward.1} parent=11 // pred_fallthru
        _
      // Predicated region
      $region21: #{cnn_forward.1} parent=11 // pred_check
        %p168 = pneg %p100
      $region22: #{cnn_forward.1} parent=11 // pred_check_branch
        %170 = sbr.rel (%p168) target = $region24
      $region23: #{cnn_forward.1} parent=11 // pred_region
        _
      $region24: #{cnn_forward.1} parent=11 // pred_fallthru
        _
      // Predicated region
      $region25: #{cnn_forward.1} parent=11 // pred_check
        %p171 = pneg %p121
      $region26: #{cnn_forward.1} parent=11 // pred_check_branch
        %173 = sbr.rel (%p171) target = $region28
      $region27: #{cnn_forward.1} parent=11 // pred_region
        _
      $region28: #{cnn_forward.1} parent=11 // pred_fallthru
        _
    $region12: #{cnn_forward.1} parent=5 // pred_fallthru
      _
    %p174 = scmp.lt.s32.totalorder %s11, 2
    // Predicated region
    $region29: #{cnn_forward.1} parent=5 // pred_check
      %p175 = pneg %p174
    $region30: #{cnn_forward.1} parent=5 // pred_check_branch
      %177 = sbr.rel (%p175) target = $region32
    $region31: #{cnn_forward.1} parent=5 // pred_region
      // Predicated region
      $region33: #{cnn_forward.1} parent=31 // pred_check
        %p178 = pneg %p31
      $region34: #{cnn_forward.1} parent=31 // pred_check_branch
        %180 = sbr.rel (%p178) target = $region36
      $region35: #{cnn_forward.1} parent=31 // pred_region
        %s181 = smul.u32 28, %s11
        %p182 = scmp.lt.s32.totalorder %s181, 55
        %s183 = scalar_select %p182, %s181, 55
        %s184 = smul.addr %s183, 4
        %s185 = scalar_lea.vmem %s0, %s184
        %s186 = smul.u32 28, %s11
      $region36: #{cnn_forward.1} parent=31 // pred_fallthru
        _
    $region32: #{cnn_forward.1} parent=5 // pred_fallthru
      _
    %p187 = scmp.le.s32.totalorder 1, %s11
    %p188 = scmp.lt.s32.totalorder %s11, 3
    %p189 = pnand %p187, %p188
    %p190 = pneg %p189
    // Predicated region
    $region37: #{cnn_forward.1} parent=5 // pred_check
      _
    $region38: #{cnn_forward.1} parent=5 // pred_check_branch
      %192 = sbr.rel (%p189) target = $region40
    $region39: #{cnn_forward.1} parent=5 // pred_region
      %s193 = ssub.s32 %s11, 1
      %s194 = smul.u32 28, %s16
      %p195 = scmp.lt.s32.totalorder %s194, 55
      %s196 = scalar_select %p195, %s194, 55
      %s197 = smul.addr %s196, 4
      %s198 = scalar_lea.vmem %s0, %s197
      %p199 = pneg %p37
      %p200 = pneg %p34
      %p201 = pneg %p58
      %p202 = pneg %p55
      %p203 = pneg %p79
      %p204 = pneg %p76
      %p205 = pneg %p100
      %p206 = pneg %p97
      %p207 = pneg %p121
      %p208 = pneg %p118
      %p209 = pneg %p147
      %p210 = pneg %p144
      %s211 = smul.u32 28, %s16
      %p212 = scmp.lt.s32.totalorder %s211, 55
      %s213 = scalar_select %p212, %s211, 55
      %s214 = smul.addr %s213, 4
      %s215 = scalar_lea.vmem %s5, %s214
      %s216 = smul.u32 28, %s16
      %p217 = scmp.lt.s32.totalorder %s216, 55
      %s218 = scalar_select %p217, %s216, 55
      %s219 = smul.addr %s218, 4
      %s220 = scalar_lea.vmem %s0, %s219
      %s221 = smul.u32 28, %s16
      %s222 = smul.u32 28, %s16
      %p223 = scmp.lt.s32.totalorder %s222, 55
      %s224 = scalar_select %p223, %s222, 55
      %s225 = smul.addr %s224, 4
      %s226 = scalar_lea.vmem %s5, %s225
      %s227 = smul.u32 28, %s16
      %v229 = vld [vmem:[%s220] sm:$0xf]
      %v230 = vld [vmem:[%s220 + $0x4] sm:$0xf]
      %v231 = vld [vmem:[%s220 + $0x8] sm:$0xf]
      %v232 = vld [vmem:[%s220 + $0xc] sm:$0xf]
      %v233 = vld [vmem:[%s220 + $0x10] sm:$0xf]
      %v234 = vld [vmem:[%s220 + $0x14] sm:$0xf]
      %v235 = vld [vmem:[%s220 + $0x18] sm:$0xf]
      %v236 = vld [vmem:[%s220 + $0x1c] sm:$0xf]
      %v237 = vld [vmem:[%s220 + $0x20] sm:$0xf]
      %v238 = vld [vmem:[%s220 + $0x24] sm:$0xf]
      %v239 = vld [vmem:[%s220 + $0x28] sm:$0xf]
      %v240 = vld [vmem:[%s220 + $0x2c] sm:$0xf]
      %v241 = vld [vmem:[%s220 + $0x30] sm:$0xf]
      %v242 = vld [vmem:[%s220 + $0x34] sm:$0xf]
      %v243 = vld [vmem:[%s220 + $0x38] sm:$0xf]
      %v244 = vld [vmem:[%s220 + $0x3c] sm:$0xf]
      %v245 = vld [vmem:[%s220 + $0x40] sm:$0xf]
      %v246 = vld [vmem:[%s220 + $0x44] sm:$0xf]
      %v247 = vld [vmem:[%s220 + $0x48] sm:$0xf]
      %v248 = vld [vmem:[%s220 + $0x4c] sm:$0xf]
      %v249 = vld [vmem:[%s220 + $0x50] sm:$0xf]
      %v250 = vld [vmem:[%s220 + $0x54] sm:$0xf]
      %v251 = vld [vmem:[%s220 + $0x58] sm:$0xf]
      %v252 = vld [vmem:[%s220 + $0x5c] sm:$0xf]
      %v253 = vld [vmem:[%s220 + $0x60] sm:$0xf]
      %v254 = vld [vmem:[%s220 + $0x64] sm:$0xf]
      %v255 = vld [vmem:[%s220 + $0x68] sm:$0xf]
      %v256 = vld [vmem:[%s220 + $0x6c] sm:$0xf]
      %v257 = vld [vmem:[%s1] sm:$0xf]
      %v258 = vld [vmem:[%s1 + $0x4] sm:$0xf]
      %v259 = vld [vmem:[%s2] sm:$0x1]
      %v260 = vlaneseq
      %v261 = vshrl.u32 %v260, 7
      %v262 = vsub.s32 0, %v261
      %v263 = vrot.slane %v259, %v262
      %v292 = vunpack.c.l.b16 %v229
      %v293 = vunpack.c.l.b16 %v230
      %v294 = vunpack.c.l.b16 %v231
      %v295 = vunpack.c.l.b16 %v232
      %v296 = vunpack.c.l.b16 %v233
      %v297 = vunpack.c.l.b16 %v234
      %v298 = vunpack.c.l.b16 %v235
      %v299 = vunpack.c.l.b16 %v236
      %v300 = vunpack.c.l.b16 %v237
      %v301 = vunpack.c.l.b16 %v238
      %v302 = vunpack.c.l.b16 %v239
      %v303 = vunpack.c.l.b16 %v240
      %v304 = vunpack.c.l.b16 %v241
      %v305 = vunpack.c.l.b16 %v242
      %v306 = vunpack.c.l.b16 %v243
      %v307 = vunpack.c.l.b16 %v244
      %v308 = vunpack.c.l.b16 %v245
      %v309 = vunpack.c.l.b16 %v246
      %v310 = vunpack.c.l.b16 %v247
      %v311 = vunpack.c.l.b16 %v248
      %v312 = vunpack.c.l.b16 %v249
      %v313 = vunpack.c.l.b16 %v250
      %v314 = vunpack.c.l.b16 %v251
      %v315 = vunpack.c.l.b16 %v252
      %v316 = vunpack.c.l.b16 %v253
      %v317 = vunpack.c.l.b16 %v254
      %v318 = vunpack.c.l.b16 %v255
      %v319 = vunpack.c.l.b16 %v256
      %v320 = vpack.c.b16 %v293, %v292
      %v321 = vpack.c.b16 %v295, %v294
      %v322 = vpack.c.b16 %v297, %v296
      %v323 = vpack.c.b16 %v299, %v298
      %v324 = vpack.c.b16 %v301, %v300
      %v325 = vpack.c.b16 %v303, %v302
      %v326 = vpack.c.b16 %v305, %v304
      %v327 = vpack.c.b16 %v307, %v306
      %v328 = vpack.c.b16 %v309, %v308
      %v329 = vpack.c.b16 %v311, %v310
      %v330 = vpack.c.b16 %v313, %v312
      %v331 = vpack.c.b16 %v315, %v314
      %v332 = vpack.c.b16 %v317, %v316
      %v333 = vpack.c.b16 %v319, %v318
      %v336 = vunpack.c.l.b16 %v257
      %v337 = vunpack.c.l.b16 %v258
      %v338 = vpack.c.b16 %v337, %v336
      %vm340 = vcmask 130048
      %v342 = vsel %vm340, %v320, 0
      %v345 = vsel %vm340, %v321, 0
      %v348 = vsel %vm340, %v322, 0
      %v351 = vsel %vm340, %v323, 0
      %v354 = vsel %vm340, %v324, 0
      %v357 = vsel %vm340, %v325, 0
      %v360 = vsel %vm340, %v326, 0
      %v363 = vsel %vm340, %v327, 0
      %v366 = vsel %vm340, %v328, 0
      %v369 = vsel %vm340, %v329, 0
      %v372 = vsel %vm340, %v330, 0
      %v375 = vsel %vm340, %v331, 0
      %v378 = vsel %vm340, %v332, 0
      %v381 = vsel %vm340, %v333, 0
      %383 = vmatprep.subr.bf16.mxu0 0
      %384 = vmatpush1.bf16.msra.mxu0 0
      %385 = vmatprep.subr.bf16.mxu0 0
      %386 = vmatpush1.bf16.msra.mxu0 0
      %387 = vmatprep.subr.bf16.mxu0 0
      %388 = vmatpush1.bf16.msra.mxu0 0
      %389 = vmatprep.subr.bf16.mxu0 0
      %390 = vmatpush1.bf16.msra.mxu0 0
      %391 = vmatprep.subr.bf16.mxu0 0
      %392 = vmatpush1.bf16.msra.mxu0 0
      %393 = vmatprep.subr.bf16.mxu0 0
      %394 = vmatpush1.bf16.msra.mxu0 0
      %395 = vmatprep.subr.bf16.mxu0 0
      %396 = vmatpush1.bf16.msra.mxu0 0
      %397 = vmatprep.subr.bf16.mxu0 0
      %398 = vmatpush1.bf16.msra.mxu0 %v338
      %399 = vmatprep.subr.bf16.mxu0 0
      %400 = vmatpush2.bf16.msra.mxu0 0
      %401 = vmatprep.subr.bf16.mxu0 0
      %402 = vmatpush2.bf16.msra.mxu0 0
      %403 = vmatprep.subr.bf16.mxu0 0
      %404 = vmatpush2.bf16.msra.mxu0 0
      %405 = vmatprep.subr.bf16.mxu0 0
      %406 = vmatpush2.bf16.msra.mxu0 0
      %407 = vmatprep.subr.bf16.mxu0 0
      %408 = vmatpush2.bf16.msra.mxu0 0
      %409 = vmatprep.subr.bf16.mxu0 0
      %410 = vmatpush2.bf16.msra.mxu0 0
      %411 = vmatprep.subr.bf16.mxu0 0
      %412 = vmatpush2.bf16.msra.mxu0 0
      %413 = vmatprep.subr.bf16.mxu0 0
      %414 = vmatpush2.bf16.msra.mxu0 0
      %415 = vmatprep.mubr.bf16.mxu0 0
      %416 = vmatmul.mubr.bf16.gmra.mxu0 %v342
      %v417 = vpop.f32.mrf.mxu0
      %v418 = vadd.f32 %v263, %v417
      %v419 = vpop.f32.mrf.mxu0
      %v420 = vpop.f32.mrf.mxu0
      %v421 = vadd.f32 %v263, %v420
      %v422 = vpop.f32.mrf.mxu0
      %423 = vmatprep.mubr.bf16.mxu0 0
      %424 = vmatmul.mubr.bf16.gmra.mxu0 %v345
      %v425 = vpop.f32.mrf.mxu0
      %v426 = vadd.f32 %v263, %v425
      %v427 = vpop.f32.mrf.mxu0
      %v428 = vpop.f32.mrf.mxu0
      %v429 = vadd.f32 %v263, %v428
      %v430 = vpop.f32.mrf.mxu0
      %431 = vmatprep.mubr.bf16.mxu0 0
      %432 = vmatmul.mubr.bf16.gmra.mxu0 %v348
      %v433 = vpop.f32.mrf.mxu0
      %v434 = vadd.f32 %v263, %v433
      %v435 = vpop.f32.mrf.mxu0
      %v436 = vpop.f32.mrf.mxu0
      %v437 = vadd.f32 %v263, %v436
      %v438 = vpop.f32.mrf.mxu0
      %439 = vmatprep.mubr.bf16.mxu0 0
      %440 = vmatmul.mubr.bf16.gmra.mxu0 %v351
      %v441 = vpop.f32.mrf.mxu0
      %v442 = vadd.f32 %v263, %v441
      %v443 = vpop.f32.mrf.mxu0
      %v444 = vpop.f32.mrf.mxu0
      %v445 = vadd.f32 %v263, %v444
      %v446 = vpop.f32.mrf.mxu0
      %447 = vmatprep.mubr.bf16.mxu0 0
      %448 = vmatmul.mubr.bf16.gmra.mxu0 %v354
      %v449 = vpop.f32.mrf.mxu0
      %v450 = vadd.f32 %v263, %v449
      %v451 = vpop.f32.mrf.mxu0
      %v452 = vpop.f32.mrf.mxu0
      %v453 = vadd.f32 %v263, %v452
      %v454 = vpop.f32.mrf.mxu0
      %455 = vmatprep.mubr.bf16.mxu0 0
      %456 = vmatmul.mubr.bf16.gmra.mxu0 %v357
      %v457 = vpop.f32.mrf.mxu0
      %v458 = vadd.f32 %v263, %v457
      %v459 = vpop.f32.mrf.mxu0
      %v460 = vpop.f32.mrf.mxu0
      %v461 = vadd.f32 %v263, %v460
      %v462 = vpop.f32.mrf.mxu0
      %463 = vmatprep.mubr.bf16.mxu0 0
      %464 = vmatmul.mubr.bf16.gmra.mxu0 %v360
      %v465 = vpop.f32.mrf.mxu0
      %v466 = vadd.f32 %v263, %v465
      %v467 = vpop.f32.mrf.mxu0
      %v468 = vpop.f32.mrf.mxu0
      %v469 = vadd.f32 %v263, %v468
      %v470 = vpop.f32.mrf.mxu0
      %471 = vmatprep.mubr.bf16.mxu0 0
      %472 = vmatmul.mubr.bf16.gmra.mxu0 %v363
      %v473 = vpop.f32.mrf.mxu0
      %v474 = vadd.f32 %v263, %v473
      %v475 = vpop.f32.mrf.mxu0
      %v476 = vpop.f32.mrf.mxu0
      %v477 = vadd.f32 %v263, %v476
      %v478 = vpop.f32.mrf.mxu0
      %479 = vmatprep.mubr.bf16.mxu0 0
      %480 = vmatmul.mubr.bf16.gmra.mxu0 %v366
      %v481 = vpop.f32.mrf.mxu0
      %v482 = vadd.f32 %v263, %v481
      %v483 = vpop.f32.mrf.mxu0
      %v484 = vpop.f32.mrf.mxu0
      %v485 = vadd.f32 %v263, %v484
      %v486 = vpop.f32.mrf.mxu0
      %487 = vmatprep.mubr.bf16.mxu0 0
      %488 = vmatmul.mubr.bf16.gmra.mxu0 %v369
      %v489 = vpop.f32.mrf.mxu0
      %v490 = vadd.f32 %v263, %v489
      %v491 = vpop.f32.mrf.mxu0
      %v492 = vpop.f32.mrf.mxu0
      %v493 = vadd.f32 %v263, %v492
      %v494 = vpop.f32.mrf.mxu0
      %495 = vmatprep.mubr.bf16.mxu0 0
      %496 = vmatmul.mubr.bf16.gmra.mxu0 %v372
      %v497 = vpop.f32.mrf.mxu0
      %v498 = vadd.f32 %v263, %v497
      %v499 = vpop.f32.mrf.mxu0
      %v500 = vpop.f32.mrf.mxu0
      %v501 = vadd.f32 %v263, %v500
      %v502 = vpop.f32.mrf.mxu0
      %503 = vmatprep.mubr.bf16.mxu0 0
      %504 = vmatmul.mubr.bf16.gmra.mxu0 %v375
      %v505 = vpop.f32.mrf.mxu0
      %v506 = vadd.f32 %v263, %v505
      %v507 = vpop.f32.mrf.mxu0
      %v508 = vpop.f32.mrf.mxu0
      %v509 = vadd.f32 %v263, %v508
      %v510 = vpop.f32.mrf.mxu0
      %511 = vmatprep.mubr.bf16.mxu0 0
      %512 = vmatmul.mubr.bf16.gmra.mxu0 %v378
      %v513 = vpop.f32.mrf.mxu0
      %v514 = vadd.f32 %v263, %v513
      %v515 = vpop.f32.mrf.mxu0
      %v516 = vpop.f32.mrf.mxu0
      %v517 = vadd.f32 %v263, %v516
      %v518 = vpop.f32.mrf.mxu0
      %519 = vmatprep.mubr.bf16.mxu0 0
      %520 = vmatmul.mubr.bf16.gmra.mxu0 %v381
      %v521 = vpop.f32.mrf.mxu0
      %v522 = vadd.f32 %v263, %v521
      %v523 = vpop.f32.mrf.mxu0
      %v524 = vpop.f32.mrf.mxu0
      %v525 = vadd.f32 %v263, %v524
      %v526 = vpop.f32.mrf.mxu0
      %527 = vdwg.mxu0
      %v528 = vmax.f32 %v418, 0.0
      %v529 = vmax.f32 %v421, 0.0
      %v530 = vmax.f32 %v426, 0.0
      %v531 = vmax.f32 %v429, 0.0
      %v532 = vmax.f32 %v434, 0.0
      %v533 = vmax.f32 %v437, 0.0
      %v534 = vmax.f32 %v442, 0.0
      %v535 = vmax.f32 %v445, 0.0
      %v536 = vmax.f32 %v450, 0.0
      %v537 = vmax.f32 %v453, 0.0
      %v538 = vmax.f32 %v458, 0.0
      %v539 = vmax.f32 %v461, 0.0
      %v540 = vmax.f32 %v466, 0.0
      %v541 = vmax.f32 %v469, 0.0
      %v542 = vmax.f32 %v474, 0.0
      %v543 = vmax.f32 %v477, 0.0
      %v544 = vmax.f32 %v482, 0.0
      %v545 = vmax.f32 %v485, 0.0
      %v546 = vmax.f32 %v490, 0.0
      %v547 = vmax.f32 %v493, 0.0
      %v548 = vmax.f32 %v498, 0.0
      %v549 = vmax.f32 %v501, 0.0
      %v550 = vmax.f32 %v506, 0.0
      %v551 = vmax.f32 %v509, 0.0
      %v552 = vmax.f32 %v514, 0.0
      %v553 = vmax.f32 %v517, 0.0
      %v554 = vmax.f32 %v522, 0.0
      %v555 = vmax.f32 %v525, 0.0
      %v556 = vld [vmem:[%s2 + $0x1] sm:$0x1]
      %v557 = vlaneseq
      %v558 = vshrl.u32 %v557, 7
      %v559 = vsub.s32 0, %v558
      %v560 = vrot.slane %v556, %v559
      %v561 = vmul.f32 %v528, %v560
      %v562 = vmul.f32 %v529, %v560
      %v563 = vmul.f32 %v530, %v560
      %v564 = vmul.f32 %v531, %v560
      %v565 = vmul.f32 %v532, %v560
      %v566 = vmul.f32 %v533, %v560
      %v567 = vmul.f32 %v534, %v560
      %v568 = vmul.f32 %v535, %v560
      %v569 = vmul.f32 %v536, %v560
      %v570 = vmul.f32 %v537, %v560
      %v571 = vmul.f32 %v538, %v560
      %v572 = vmul.f32 %v539, %v560
      %v573 = vmul.f32 %v540, %v560
      %v574 = vmul.f32 %v541, %v560
      %v575 = vmul.f32 %v542, %v560
      %v576 = vmul.f32 %v543, %v560
      %v577 = vmul.f32 %v544, %v560
      %v578 = vmul.f32 %v545, %v560
      %v579 = vmul.f32 %v546, %v560
      %v580 = vmul.f32 %v547, %v560
      %v581 = vmul.f32 %v548, %v560
      %v582 = vmul.f32 %v549, %v560
      %v583 = vmul.f32 %v550, %v560
      %v584 = vmul.f32 %v551, %v560
      %v585 = vmul.f32 %v552, %v560
      %v586 = vmul.f32 %v553, %v560
      %v587 = vmul.f32 %v554, %v560
      %v588 = vmul.f32 %v555, %v560
      %v589 = vld [vmem:[%s2 + $0x2] sm:$0x1]
      %v590 = vlaneseq
      %v591 = vshrl.u32 %v590, 7
      %v592 = vsub.s32 0, %v591
      %v593 = vrot.slane %v589, %v592
      %v594 = vadd.f32 %v561, %v593
      %v595 = vadd.f32 %v562, %v593
      %v596 = vadd.f32 %v563, %v593
      %v597 = vadd.f32 %v564, %v593
      %v598 = vadd.f32 %v565, %v593
      %v599 = vadd.f32 %v566, %v593
      %v600 = vadd.f32 %v567, %v593
      %v601 = vadd.f32 %v568, %v593
      %v602 = vadd.f32 %v569, %v593
      %v603 = vadd.f32 %v570, %v593
      %v604 = vadd.f32 %v571, %v593
      %v605 = vadd.f32 %v572, %v593
      %v606 = vadd.f32 %v573, %v593
      %v607 = vadd.f32 %v574, %v593
      %v608 = vadd.f32 %v575, %v593
      %v609 = vadd.f32 %v576, %v593
      %v610 = vadd.f32 %v577, %v593
      %v611 = vadd.f32 %v578, %v593
      %v612 = vadd.f32 %v579, %v593
      %v613 = vadd.f32 %v580, %v593
      %v614 = vadd.f32 %v581, %v593
      %v615 = vadd.f32 %v582, %v593
      %v616 = vadd.f32 %v583, %v593
      %v617 = vadd.f32 %v584, %v593
      %v618 = vadd.f32 %v585, %v593
      %v619 = vadd.f32 %v586, %v593
      %v620 = vadd.f32 %v587, %v593
      %v621 = vadd.f32 %v588, %v593
      %622 = vst.msk [vmem:[#allocation2] sm:$0xff] %vm340, %v594
      %623 = vst.msk [vmem:[#allocation2 + $0x8] sm:$0xff] %vm340, %v595
      %624 = vst.msk [vmem:[#allocation2 + $0x10] sm:$0xff] %vm340, %v596
      %625 = vst.msk [vmem:[#allocation2 + $0x18] sm:$0xff] %vm340, %v597
      %626 = vst.msk [vmem:[#allocation2 + $0x20] sm:$0xff] %vm340, %v598
      %627 = vst.msk [vmem:[#allocation2 + $0x28] sm:$0xff] %vm340, %v599
      %628 = vst.msk [vmem:[#allocation2 + $0x30] sm:$0xff] %vm340, %v600
      %629 = vst.msk [vmem:[#allocation2 + $0x38] sm:$0xff] %vm340, %v601
      %630 = vst.msk [vmem:[#allocation2 + $0x40] sm:$0xff] %vm340, %v602
      %631 = vst.msk [vmem:[#allocation2 + $0x48] sm:$0xff] %vm340, %v603
      %632 = vst.msk [vmem:[#allocation2 + $0x50] sm:$0xff] %vm340, %v604
      %633 = vst.msk [vmem:[#allocation2 + $0x58] sm:$0xff] %vm340, %v605
      %634 = vst.msk [vmem:[#allocation2 + $0x60] sm:$0xff] %vm340, %v606
      %635 = vst.msk [vmem:[#allocation2 + $0x68] sm:$0xff] %vm340, %v607
      %636 = vst.msk [vmem:[#allocation2 + $0x70] sm:$0xff] %vm340, %v608
      %637 = vst.msk [vmem:[#allocation2 + $0x78] sm:$0xff] %vm340, %v609
      %638 = vst.msk [vmem:[#allocation2 + $0x80] sm:$0xff] %vm340, %v610
      %639 = vst.msk [vmem:[#allocation2 + $0x88] sm:$0xff] %vm340, %v611
      %640 = vst.msk [vmem:[#allocation2 + $0x90] sm:$0xff] %vm340, %v612
      %641 = vst.msk [vmem:[#allocation2 + $0x98] sm:$0xff] %vm340, %v613
      %642 = vst.msk [vmem:[#allocation2 + $0xa0] sm:$0xff] %vm340, %v614
      %643 = vst.msk [vmem:[#allocation2 + $0xa8] sm:$0xff] %vm340, %v615
      %644 = vst.msk [vmem:[#allocation2 + $0xb0] sm:$0xff] %vm340, %v616
      %645 = vst.msk [vmem:[#allocation2 + $0xb8] sm:$0xff] %vm340, %v617
      %646 = vst.msk [vmem:[#allocation2 + $0xc0] sm:$0xff] %vm340, %v618
      %647 = vst.msk [vmem:[#allocation2 + $0xc8] sm:$0xff] %vm340, %v619
      %648 = vst.msk [vmem:[#allocation2 + $0xd0] sm:$0xff] %vm340, %v620
      %649 = vst.msk [vmem:[#allocation2 + $0xd8] sm:$0xff] %vm340, %v621
      %650 = vst.msk [vmem:[#allocation2 + $0xe0] sm:$0xff] %vm340, 0.0
      %651 = vst.msk [vmem:[#allocation2 + $0xe8] sm:$0xff] %vm340, 0.0
      %652 = vst.msk [vmem:[#allocation2 + $0xf0] sm:$0xff] %vm340, 0.0
      %653 = vst.msk [vmem:[#allocation2 + $0xf8] sm:$0xff] %vm340, 0.0
      %654 = vst.msk [vmem:[#allocation2 + $0x100] sm:$0xff] %vm340, 0.0
      %v655 = vld [vmem:[#allocation2] sm:$0xff]
      %v656 = vld [vmem:[#allocation2 + $0x8] sm:$0xff]
      %v657 = vld [vmem:[#allocation2 + $0x10] sm:$0xff]
      %v658 = vld [vmem:[#allocation2 + $0x18] sm:$0xff]
      %v659 = vld [vmem:[#allocation2 + $0x20] sm:$0xff]
      %v660 = vld [vmem:[#allocation2 + $0x28] sm:$0xff]
      %v661 = vld [vmem:[#allocation2 + $0x30] sm:$0xff]
      %v662 = vld [vmem:[#allocation2 + $0x38] sm:$0xff]
      %v663 = vld [vmem:[#allocation2 + $0x40] sm:$0xff]
      %v664 = vld [vmem:[#allocation2 + $0x48] sm:$0xff]
      %v665 = vld [vmem:[#allocation2 + $0x50] sm:$0xff]
      %v666 = vld [vmem:[#allocation2 + $0x58] sm:$0xff]
      %v667 = vld [vmem:[#allocation2 + $0x60] sm:$0xff]
      %v668 = vld [vmem:[#allocation2 + $0x68] sm:$0xff]
      %v669 = vld [vmem:[#allocation2 + $0x70] sm:$0xff]
      %v670 = vld [vmem:[#allocation2 + $0x78] sm:$0xff]
      %v671 = vld [vmem:[#allocation2 + $0x80] sm:$0xff]
      %v672 = vld [vmem:[#allocation2 + $0x88] sm:$0xff]
      %v673 = vld [vmem:[#allocation2 + $0x90] sm:$0xff]
      %v674 = vld [vmem:[#allocation2 + $0x98] sm:$0xff]
      %v675 = vld [vmem:[#allocation2 + $0xa0] sm:$0xff]
      %v676 = vld [vmem:[#allocation2 + $0xa8] sm:$0xff]
      %v677 = vld [vmem:[#allocation2 + $0xb0] sm:$0xff]
      %v678 = vld [vmem:[#allocation2 + $0xb8] sm:$0xff]
      %v679 = vld [vmem:[#allocation2 + $0xc0] sm:$0xff]
      %v680 = vld [vmem:[#allocation2 + $0xc8] sm:$0xff]
      %v681 = vld [vmem:[#allocation2 + $0xd0] sm:$0xff]
      %v682 = vld [vmem:[#allocation2 + $0xd8] sm:$0xff]
      %v683 = vld [vmem:[#allocation2 + $0xe0] sm:$0xff]
      %v684 = vld [vmem:[#allocation2 + $0xe8] sm:$0xff]
      %v685 = vld [vmem:[#allocation2 + $0xf0] sm:$0xff]
      %v686 = vld [vmem:[#allocation2 + $0xf8] sm:$0xff]
      %v687 = vld [vmem:[#allocation2 + $0x1] sm:$0xff]
      %v688 = vld [vmem:[#allocation2 + $0x9] sm:$0xff]
      %v689 = vld [vmem:[#allocation2 + $0x11] sm:$0xff]
      %v690 = vld [vmem:[#allocation2 + $0x19] sm:$0xff]
      %v691 = vld [vmem:[#allocation2 + $0x21] sm:$0xff]
      %v692 = vld [vmem:[#allocation2 + $0x29] sm:$0xff]
      %v693 = vld [vmem:[#allocation2 + $0x31] sm:$0xff]
      %v694 = vld [vmem:[#allocation2 + $0x39] sm:$0xff]
      %v695 = vld [vmem:[#allocation2 + $0x41] sm:$0xff]
      %v696 = vld [vmem:[#allocation2 + $0x49] sm:$0xff]
      %v697 = vld [vmem:[#allocation2 + $0x51] sm:$0xff]
      %v698 = vld [vmem:[#allocation2 + $0x59] sm:$0xff]
      %v699 = vld [vmem:[#allocation2 + $0x61] sm:$0xff]
      %v700 = vld [vmem:[#allocation2 + $0x69] sm:$0xff]
      %v701 = vld [vmem:[#allocation2 + $0x71] sm:$0xff]
      %v702 = vld [vmem:[#allocation2 + $0x79] sm:$0xff]
      %v703 = vld [vmem:[#allocation2 + $0x81] sm:$0xff]
      %v704 = vld [vmem:[#allocation2 + $0x89] sm:$0xff]
      %v705 = vld [vmem:[#allocation2 + $0x91] sm:$0xff]
      %v706 = vld [vmem:[#allocation2 + $0x99] sm:$0xff]
      %v707 = vld [vmem:[#allocation2 + $0xa1] sm:$0xff]
      %v708 = vld [vmem:[#allocation2 + $0xa9] sm:$0xff]
      %v709 = vld [vmem:[#allocation2 + $0xb1] sm:$0xff]
      %v710 = vld [vmem:[#allocation2 + $0xb9] sm:$0xff]
      %v711 = vld [vmem:[#allocation2 + $0xc1] sm:$0xff]
      %v712 = vld [vmem:[#allocation2 + $0xc9] sm:$0xff]
      %v713 = vld [vmem:[#allocation2 + $0xd1] sm:$0xff]
      %v714 = vld [vmem:[#allocation2 + $0xd9] sm:$0xff]
      %v715 = vld [vmem:[#allocation2 + $0xe1] sm:$0xff]
      %v716 = vld [vmem:[#allocation2 + $0xe9] sm:$0xff]
      %v717 = vld [vmem:[#allocation2 + $0xf1] sm:$0xff]
      %v718 = vld [vmem:[#allocation2 + $0xf9] sm:$0xff]
      %v719 = vld [vmem:[#allocation2 + $0x2] sm:$0xff]
      %v720 = vld [vmem:[#allocation2 + $0xa] sm:$0xff]
      %v721 = vld [vmem:[#allocation2 + $0x12] sm:$0xff]
      %v722 = vld [vmem:[#allocation2 + $0x1a] sm:$0xff]
      %v723 = vld [vmem:[#allocation2 + $0x22] sm:$0xff]
      %v724 = vld [vmem:[#allocation2 + $0x2a] sm:$0xff]
      %v725 = vld [vmem:[#allocation2 + $0x32] sm:$0xff]
      %v726 = vld [vmem:[#allocation2 + $0x3a] sm:$0xff]
      %v727 = vld [vmem:[#allocation2 + $0x42] sm:$0xff]
      %v728 = vld [vmem:[#allocation2 + $0x4a] sm:$0xff]
      %v729 = vld [vmem:[#allocation2 + $0x52] sm:$0xff]
      %v730 = vld [vmem:[#allocation2 + $0x5a] sm:$0xff]
      %v731 = vld [vmem:[#allocation2 + $0x62] sm:$0xff]
      %v732 = vld [vmem:[#allocation2 + $0x6a] sm:$0xff]
      %v733 = vld [vmem:[#allocation2 + $0x72] sm:$0xff]
      %v734 = vld [vmem:[#allocation2 + $0x7a] sm:$0xff]
      %v735 = vld [vmem:[#allocation2 + $0x82] sm:$0xff]
      %v736 = vld [vmem:[#allocation2 + $0x8a] sm:$0xff]
      %v737 = vld [vmem:[#allocation2 + $0x92] sm:$0xff]
      %v738 = vld [vmem:[#allocation2 + $0x9a] sm:$0xff]
      %v739 = vld [vmem:[#allocation2 + $0xa2] sm:$0xff]
      %v740 = vld [vmem:[#allocation2 + $0xaa] sm:$0xff]
      %v741 = vld [vmem:[#allocation2 + $0xb2] sm:$0xff]
      %v742 = vld [vmem:[#allocation2 + $0xba] sm:$0xff]
      %v743 = vld [vmem:[#allocation2 + $0xc2] sm:$0xff]
      %v744 = vld [vmem:[#allocation2 + $0xca] sm:$0xff]
      %v745 = vld [vmem:[#allocation2 + $0xd2] sm:$0xff]
      %v746 = vld [vmem:[#allocation2 + $0xda] sm:$0xff]
      %v747 = vld [vmem:[#allocation2 + $0xe2] sm:$0xff]
      %v748 = vld [vmem:[#allocation2 + $0xea] sm:$0xff]
      %v749 = vld [vmem:[#allocation2 + $0xf2] sm:$0xff]
      %v750 = vld [vmem:[#allocation2 + $0xfa] sm:$0xff]
      %783 = vrot.lane.b32.xlu0 %v687, 16
      %v784 = vpop.permute.xlu0 %783
      %785 = vrot.lane.b32.xlu0 %v688, 16
      %v786 = vpop.permute.xlu0 %785
      %787 = vrot.lane.b32.xlu0 %v689, 16
      %v788 = vpop.permute.xlu0 %787
      %789 = vrot.lane.b32.xlu0 %v690, 16
      %v790 = vpop.permute.xlu0 %789
      %791 = vrot.lane.b32.xlu0 %v691, 16
      %v792 = vpop.permute.xlu0 %791
      %793 = vrot.lane.b32.xlu0 %v692, 16
      %v794 = vpop.permute.xlu0 %793
      %795 = vrot.lane.b32.xlu0 %v693, 16
      %v796 = vpop.permute.xlu0 %795
      %797 = vrot.lane.b32.xlu0 %v694, 16
      %v798 = vpop.permute.xlu0 %797
      %799 = vrot.lane.b32.xlu0 %v695, 16
      %v800 = vpop.permute.xlu0 %799
      %801 = vrot.lane.b32.xlu0 %v696, 16
      %v802 = vpop.permute.xlu0 %801
      %803 = vrot.lane.b32.xlu0 %v697, 16
      %v804 = vpop.permute.xlu0 %803
      %805 = vrot.lane.b32.xlu0 %v698, 16
      %v806 = vpop.permute.xlu0 %805
      %807 = vrot.lane.b32.xlu0 %v699, 16
      %v808 = vpop.permute.xlu0 %807
      %809 = vrot.lane.b32.xlu0 %v700, 16
      %v810 = vpop.permute.xlu0 %809
      %811 = vrot.lane.b32.xlu0 %v701, 16
      %v812 = vpop.permute.xlu0 %811
      %813 = vrot.lane.b32.xlu0 %v702, 16
      %v814 = vpop.permute.xlu0 %813
      %815 = vrot.lane.b32.xlu0 %v703, 16
      %v816 = vpop.permute.xlu0 %815
      %817 = vrot.lane.b32.xlu0 %v704, 16
      %v818 = vpop.permute.xlu0 %817
      %819 = vrot.lane.b32.xlu0 %v705, 16
      %v820 = vpop.permute.xlu0 %819
      %821 = vrot.lane.b32.xlu0 %v706, 16
      %v822 = vpop.permute.xlu0 %821
      %823 = vrot.lane.b32.xlu0 %v707, 16
      %v824 = vpop.permute.xlu0 %823
      %825 = vrot.lane.b32.xlu0 %v708, 16
      %v826 = vpop.permute.xlu0 %825
      %827 = vrot.lane.b32.xlu0 %v709, 16
      %v828 = vpop.permute.xlu0 %827
      %829 = vrot.lane.b32.xlu0 %v710, 16
      %v830 = vpop.permute.xlu0 %829
      %831 = vrot.lane.b32.xlu0 %v711, 16
      %v832 = vpop.permute.xlu0 %831
      %833 = vrot.lane.b32.xlu0 %v712, 16
      %v834 = vpop.permute.xlu0 %833
      %835 = vrot.lane.b32.xlu0 %v713, 16
      %v836 = vpop.permute.xlu0 %835
      %837 = vrot.lane.b32.xlu0 %v714, 16
      %v838 = vpop.permute.xlu0 %837
      %839 = vrot.lane.b32.xlu0 %v715, 16
      %v840 = vpop.permute.xlu0 %839
      %841 = vrot.lane.b32.xlu0 %v716, 16
      %v842 = vpop.permute.xlu0 %841
      %843 = vrot.lane.b32.xlu0 %v717, 16
      %v844 = vpop.permute.xlu0 %843
      %845 = vrot.lane.b32.xlu0 %v718, 16
      %v846 = vpop.permute.xlu0 %845
      %911 = vrot.lane.b32.xlu0 %v719, 32
      %v912 = vpop.permute.xlu0 %911
      %913 = vrot.lane.b32.xlu0 %v720, 32
      %v914 = vpop.permute.xlu0 %913
      %915 = vrot.lane.b32.xlu0 %v721, 32
      %v916 = vpop.permute.xlu0 %915
      %917 = vrot.lane.b32.xlu0 %v722, 32
      %v918 = vpop.permute.xlu0 %917
      %919 = vrot.lane.b32.xlu0 %v723, 32
      %v920 = vpop.permute.xlu0 %919
      %921 = vrot.lane.b32.xlu0 %v724, 32
      %v922 = vpop.permute.xlu0 %921
      %923 = vrot.lane.b32.xlu0 %v725, 32
      %v924 = vpop.permute.xlu0 %923
      %925 = vrot.lane.b32.xlu0 %v726, 32
      %v926 = vpop.permute.xlu0 %925
      %927 = vrot.lane.b32.xlu0 %v727, 32
      %v928 = vpop.permute.xlu0 %927
      %929 = vrot.lane.b32.xlu0 %v728, 32
      %v930 = vpop.permute.xlu0 %929
      %931 = vrot.lane.b32.xlu0 %v729, 32
      %v932 = vpop.permute.xlu0 %931
      %933 = vrot.lane.b32.xlu0 %v730, 32
      %v934 = vpop.permute.xlu0 %933
      %935 = vrot.lane.b32.xlu0 %v731, 32
      %v936 = vpop.permute.xlu0 %935
      %937 = vrot.lane.b32.xlu0 %v732, 32
      %v938 = vpop.permute.xlu0 %937
      %939 = vrot.lane.b32.xlu0 %v733, 32
      %v940 = vpop.permute.xlu0 %939
      %941 = vrot.lane.b32.xlu0 %v734, 32
      %v942 = vpop.permute.xlu0 %941
      %943 = vrot.lane.b32.xlu0 %v735, 32
      %v944 = vpop.permute.xlu0 %943
      %945 = vrot.lane.b32.xlu0 %v736, 32
      %v946 = vpop.permute.xlu0 %945
      %947 = vrot.lane.b32.xlu0 %v737, 32
      %v948 = vpop.permute.xlu0 %947
      %949 = vrot.lane.b32.xlu0 %v738, 32
      %v950 = vpop.permute.xlu0 %949
      %951 = vrot.lane.b32.xlu0 %v739, 32
      %v952 = vpop.permute.xlu0 %951
      %953 = vrot.lane.b32.xlu0 %v740, 32
      %v954 = vpop.permute.xlu0 %953
      %955 = vrot.lane.b32.xlu0 %v741, 32
      %v956 = vpop.permute.xlu0 %955
      %957 = vrot.lane.b32.xlu0 %v742, 32
      %v958 = vpop.permute.xlu0 %957
      %959 = vrot.lane.b32.xlu0 %v743, 32
      %v960 = vpop.permute.xlu0 %959
      %961 = vrot.lane.b32.xlu0 %v744, 32
      %v962 = vpop.permute.xlu0 %961
      %963 = vrot.lane.b32.xlu0 %v745, 32
      %v964 = vpop.permute.xlu0 %963
      %965 = vrot.lane.b32.xlu0 %v746, 32
      %v966 = vpop.permute.xlu0 %965
      %967 = vrot.lane.b32.xlu0 %v747, 32
      %v968 = vpop.permute.xlu0 %967
      %969 = vrot.lane.b32.xlu0 %v748, 32
      %v970 = vpop.permute.xlu0 %969
      %971 = vrot.lane.b32.xlu0 %v749, 32
      %v972 = vpop.permute.xlu0 %971
      %973 = vrot.lane.b32.xlu0 %v750, 32
      %v974 = vpop.permute.xlu0 %973
      %v1007 = vsel %vm340, %v655, %v784
      %v1008 = vsel %vm340, %v656, %v786
      %v1009 = vsel %vm340, %v657, %v788
      %v1010 = vsel %vm340, %v658, %v790
      %v1011 = vsel %vm340, %v659, %v792
      %v1012 = vsel %vm340, %v660, %v794
      %v1013 = vsel %vm340, %v661, %v796
      %v1014 = vsel %vm340, %v662, %v798
      %v1015 = vsel %vm340, %v663, %v800
      %v1016 = vsel %vm340, %v664, %v802
      %v1017 = vsel %vm340, %v665, %v804
      %v1018 = vsel %vm340, %v666, %v806
      %v1019 = vsel %vm340, %v667, %v808
      %v1020 = vsel %vm340, %v668, %v810
      %v1021 = vsel %vm340, %v669, %v812
      %v1022 = vsel %vm340, %v670, %v814
      %v1023 = vsel %vm340, %v671, %v816
      %v1024 = vsel %vm340, %v672, %v818
      %v1025 = vsel %vm340, %v673, %v820
      %v1026 = vsel %vm340, %v674, %v822
      %v1027 = vsel %vm340, %v675, %v824
      %v1028 = vsel %vm340, %v676, %v826
      %v1029 = vsel %vm340, %v677, %v828
      %v1030 = vsel %vm340, %v678, %v830
      %v1031 = vsel %vm340, %v679, %v832
      %v1032 = vsel %vm340, %v680, %v834
      %v1033 = vsel %vm340, %v681, %v836
      %v1034 = vsel %vm340, %v682, %v838
      %v1035 = vsel %vm340, %v683, %v840
      %v1036 = vsel %vm340, %v684, %v842
      %v1037 = vsel %vm340, %v685, %v844
      %v1038 = vsel %vm340, %v686, %v846
      %vm1039 = vcmask 261120
      %v1040 = vsel %vm1039, %v1007, %v912
      %v1041 = vsel %vm1039, %v1008, %v914
      %v1042 = vsel %vm1039, %v1009, %v916
      %v1043 = vsel %vm1039, %v1010, %v918
      %v1044 = vsel %vm1039, %v1011, %v920
      %v1045 = vsel %vm1039, %v1012, %v922
      %v1046 = vsel %vm1039, %v1013, %v924
      %v1047 = vsel %vm1039, %v1014, %v926
      %v1048 = vsel %vm1039, %v1015, %v928
      %v1049 = vsel %vm1039, %v1016, %v930
      %v1050 = vsel %vm1039, %v1017, %v932
      %v1051 = vsel %vm1039, %v1018, %v934
      %v1052 = vsel %vm1039, %v1019, %v936
      %v1053 = vsel %vm1039, %v1020, %v938
      %v1054 = vsel %vm1039, %v1021, %v940
      %v1055 = vsel %vm1039, %v1022, %v942
      %v1056 = vsel %vm1039, %v1023, %v944
      %v1057 = vsel %vm1039, %v1024, %v946
      %v1058 = vsel %vm1039, %v1025, %v948
      %v1059 = vsel %vm1039, %v1026, %v950
      %v1060 = vsel %vm1039, %v1027, %v952
      %v1061 = vsel %vm1039, %v1028, %v954
      %v1062 = vsel %vm1039, %v1029, %v956
      %v1063 = vsel %vm1039, %v1030, %v958
      %v1064 = vsel %vm1039, %v1031, %v960
      %v1065 = vsel %vm1039, %v1032, %v962
      %v1066 = vsel %vm1039, %v1033, %v964
      %v1067 = vsel %vm1039, %v1034, %v966
      %v1068 = vsel %vm1039, %v1035, %v968
      %v1069 = vsel %vm1039, %v1036, %v970
      %v1070 = vsel %vm1039, %v1037, %v972
      %v1071 = vsel %vm1039, %v1038, %v974
      %v1072 = vpack.c.bf16 %v1041, %v1040
      %v1073 = vpack.c.bf16 %v1043, %v1042
      %v1074 = vpack.c.bf16 %v1045, %v1044
      %v1075 = vpack.c.bf16 %v1047, %v1046
      %v1076 = vpack.c.bf16 %v1049, %v1048
      %v1077 = vpack.c.bf16 %v1051, %v1050
      %v1078 = vpack.c.bf16 %v1053, %v1052
      %v1079 = vpack.c.bf16 %v1055, %v1054
      %v1080 = vpack.c.bf16 %v1057, %v1056
      %v1081 = vpack.c.bf16 %v1059, %v1058
      %v1082 = vpack.c.bf16 %v1061, %v1060
      %v1083 = vpack.c.bf16 %v1063, %v1062
      %v1084 = vpack.c.bf16 %v1065, %v1064
      %v1085 = vpack.c.bf16 %v1067, %v1066
      %v1086 = vpack.c.bf16 %v1069, %v1068
      %v1087 = vpack.c.bf16 %v1071, %v1070
      %v1104 = vunpack.c.l.b16 %v1072
      %v1105 = vunpack.c.h.b16 %v1072
      %v1106 = vunpack.c.l.b16 %v1073
      %v1107 = vunpack.c.h.b16 %v1073
      %v1108 = vunpack.c.l.b16 %v1074
      %v1109 = vunpack.c.h.b16 %v1074
      %v1110 = vunpack.c.l.b16 %v1075
      %v1111 = vunpack.c.h.b16 %v1075
      %v1112 = vunpack.c.l.b16 %v1076
      %v1113 = vunpack.c.h.b16 %v1076
      %v1114 = vunpack.c.l.b16 %v1077
      %v1115 = vunpack.c.h.b16 %v1077
      %v1116 = vunpack.c.l.b16 %v1078
      %v1117 = vunpack.c.h.b16 %v1078
      %v1118 = vunpack.c.l.b16 %v1079
      %v1119 = vunpack.c.h.b16 %v1079
      %v1120 = vunpack.c.l.b16 %v1080
      %v1121 = vunpack.c.h.b16 %v1080
      %v1122 = vunpack.c.l.b16 %v1081
      %v1123 = vunpack.c.h.b16 %v1081
      %v1124 = vunpack.c.l.b16 %v1082
      %v1125 = vunpack.c.h.b16 %v1082
      %v1126 = vunpack.c.l.b16 %v1083
      %v1127 = vunpack.c.h.b16 %v1083
      %v1128 = vunpack.c.l.b16 %v1084
      %v1129 = vunpack.c.h.b16 %v1084
      %v1130 = vunpack.c.l.b16 %v1085
      %v1131 = vunpack.c.h.b16 %v1085
      %v1132 = vunpack.c.l.b16 %v1086
      %v1133 = vunpack.c.h.b16 %v1086
      %v1134 = vunpack.c.l.b16 %v1087
      %v1135 = vunpack.c.h.b16 %v1087
      %v1136 = vpack.c.b16 %v1104, %v1104
      %v1137 = vpack.c.b16 %v1105, %v1105
      %v1138 = vpack.c.b16 %v1106, %v1106
      %v1139 = vpack.c.b16 %v1107, %v1107
      %v1140 = vpack.c.b16 %v1108, %v1108
      %v1141 = vpack.c.b16 %v1109, %v1109
      %v1142 = vpack.c.b16 %v1110, %v1110
      %v1143 = vpack.c.b16 %v1111, %v1111
      %v1144 = vpack.c.b16 %v1112, %v1112
      %v1145 = vpack.c.b16 %v1113, %v1113
      %v1146 = vpack.c.b16 %v1114, %v1114
      %v1147 = vpack.c.b16 %v1115, %v1115
      %v1148 = vpack.c.b16 %v1116, %v1116
      %v1149 = vpack.c.b16 %v1117, %v1117
      %v1150 = vpack.c.b16 %v1118, %v1118
      %v1151 = vpack.c.b16 %v1119, %v1119
      %v1152 = vpack.c.b16 %v1120, %v1120
      %v1153 = vpack.c.b16 %v1121, %v1121
      %v1154 = vpack.c.b16 %v1122, %v1122
      %v1155 = vpack.c.b16 %v1123, %v1123
      %v1156 = vpack.c.b16 %v1124, %v1124
      %v1157 = vpack.c.b16 %v1125, %v1125
      %v1158 = vpack.c.b16 %v1126, %v1126
      %v1159 = vpack.c.b16 %v1127, %v1127
      %v1160 = vpack.c.b16 %v1128, %v1128
      %v1161 = vpack.c.b16 %v1129, %v1129
      %v1162 = vpack.c.b16 %v1130, %v1130
      %v1163 = vpack.c.b16 %v1131, %v1131
      %v1164 = vpack.c.b16 %v1132, %v1132
      %v1165 = vpack.c.b16 %v1133, %v1133
      %v1166 = vpack.c.b16 %v1134, %v1134
      %v1167 = vpack.c.b16 %v1135, %v1135
      %vm1200 = vcmask 388096
      %1201 = vst.msk [vmem:[#allocation3] sm:$0xf] %vm1200, %v1136
      %1202 = vst.msk [vmem:[#allocation3 + $0x4] sm:$0xf] %vm1200, %v1137
      %1203 = vst.msk [vmem:[#allocation3 + $0x8] sm:$0xf] %vm1200, %v1138
      %1204 = vst.msk [vmem:[#allocation3 + $0xc] sm:$0xf] %vm1200, %v1139
      %1205 = vst.msk [vmem:[#allocation3 + $0x10] sm:$0xf] %vm1200, %v1140
      %1206 = vst.msk [vmem:[#allocation3 + $0x14] sm:$0xf] %vm1200, %v1141
      %1207 = vst.msk [vmem:[#allocation3 + $0x18] sm:$0xf] %vm1200, %v1142
      %1208 = vst.msk [vmem:[#allocation3 + $0x1c] sm:$0xf] %vm1200, %v1143
      %1209 = vst.msk [vmem:[#allocation3 + $0x20] sm:$0xf] %vm1200, %v1144
      %1210 = vst.msk [vmem:[#allocation3 + $0x24] sm:$0xf] %vm1200, %v1145
      %1211 = vst.msk [vmem:[#allocation3 + $0x28] sm:$0xf] %vm1200, %v1146
      %1212 = vst.msk [vmem:[#allocation3 + $0x2c] sm:$0xf] %vm1200, %v1147
      %1213 = vst.msk [vmem:[#allocation3 + $0x30] sm:$0xf] %vm1200, %v1148
      %1214 = vst.msk [vmem:[#allocation3 + $0x34] sm:$0xf] %vm1200, %v1149
      %1215 = vst.msk [vmem:[#allocation3 + $0x38] sm:$0xf] %vm1200, %v1150
      %1216 = vst.msk [vmem:[#allocation3 + $0x3c] sm:$0xf] %vm1200, %v1151
      %1217 = vst.msk [vmem:[#allocation3 + $0x40] sm:$0xf] %vm1200, %v1152
      %1218 = vst.msk [vmem:[#allocation3 + $0x44] sm:$0xf] %vm1200, %v1153
      %1219 = vst.msk [vmem:[#allocation3 + $0x48] sm:$0xf] %vm1200, %v1154
      %1220 = vst.msk [vmem:[#allocation3 + $0x4c] sm:$0xf] %vm1200, %v1155
      %1221 = vst.msk [vmem:[#allocation3 + $0x50] sm:$0xf] %vm1200, %v1156
      %1222 = vst.msk [vmem:[#allocation3 + $0x54] sm:$0xf] %vm1200, %v1157
      %1223 = vst.msk [vmem:[#allocation3 + $0x58] sm:$0xf] %vm1200, %v1158
      %1224 = vst.msk [vmem:[#allocation3 + $0x5c] sm:$0xf] %vm1200, %v1159
      %1225 = vst.msk [vmem:[#allocation3 + $0x60] sm:$0xf] %vm1200, %v1160
      %1226 = vst.msk [vmem:[#allocation3 + $0x64] sm:$0xf] %vm1200, %v1161
      %1227 = vst.msk [vmem:[#allocation3 + $0x68] sm:$0xf] %vm1200, %v1162
      %1228 = vst.msk [vmem:[#allocation3 + $0x6c] sm:$0xf] %vm1200, %v1163
      %1229 = vst.msk [vmem:[#allocation3 + $0x70] sm:$0xf] %vm1200, %v1164
      %1230 = vst.msk [vmem:[#allocation3 + $0x74] sm:$0xf] %vm1200, %v1165
      %1231 = vst.msk [vmem:[#allocation3 + $0x78] sm:$0xf] %vm1200, %v1166
      %1232 = vst.msk [vmem:[#allocation3 + $0x7c] sm:$0xf] %vm1200, %v1167
      %v1233 = vld [vmem:[#allocation3] sm:$0xf]
      %v1234 = vld [vmem:[#allocation3 + $0x4] sm:$0xf]
      %v1235 = vld [vmem:[#allocation3 + $0x8] sm:$0xf]
      %v1236 = vld [vmem:[#allocation3 + $0xc] sm:$0xf]
      %v1237 = vld [vmem:[#allocation3 + $0x10] sm:$0xf]
      %v1238 = vld [vmem:[#allocation3 + $0x14] sm:$0xf]
      %v1239 = vld [vmem:[#allocation3 + $0x18] sm:$0xf]
      %v1240 = vld [vmem:[#allocation3 + $0x1c] sm:$0xf]
      %v1241 = vld [vmem:[#allocation3 + $0x20] sm:$0xf]
      %v1242 = vld [vmem:[#allocation3 + $0x24] sm:$0xf]
      %v1243 = vld [vmem:[#allocation3 + $0x28] sm:$0xf]
      %v1244 = vld [vmem:[#allocation3 + $0x2c] sm:$0xf]
      %v1245 = vld [vmem:[#allocation3 + $0x30] sm:$0xf]
      %v1246 = vld [vmem:[#allocation3 + $0x34] sm:$0xf]
      %v1247 = vld [vmem:[#allocation3 + $0x38] sm:$0xf]
      %v1248 = vld [vmem:[#allocation3 + $0x3c] sm:$0xf]
      %v1249 = vld [vmem:[#allocation3 + $0x40] sm:$0xf]
      %v1250 = vld [vmem:[#allocation3 + $0x44] sm:$0xf]
      %v1251 = vld [vmem:[#allocation3 + $0x48] sm:$0xf]
      %v1252 = vld [vmem:[#allocation3 + $0x4c] sm:$0xf]
      %v1253 = vld [vmem:[#allocation3 + $0x50] sm:$0xf]
      %v1254 = vld [vmem:[#allocation3 + $0x54] sm:$0xf]
      %v1255 = vld [vmem:[#allocation3 + $0x58] sm:$0xf]
      %v1256 = vld [vmem:[#allocation3 + $0x5c] sm:$0xf]
      %v1257 = vld [vmem:[#allocation3 + $0x60] sm:$0xf]
      %v1258 = vld [vmem:[#allocation3 + $0x64] sm:$0xf]
      %v1259 = vld [vmem:[#allocation3 + $0x68] sm:$0xf]
      %v1260 = vld [vmem:[#allocation3 + $0x6c] sm:$0xf]
      %v1261 = vld [vmem:[%s3] sm:$0xf]
      %v1262 = vld [vmem:[%s3 + $0x4] sm:$0xf]
      %v1263 = vld [vmem:[%s3 + $0x8] sm:$0xf]
      %v1264 = vld [vmem:[%s3 + $0xc] sm:$0xf]
      %v1265 = vld [vmem:[%s3 + $0x10] sm:$0xf]
      %v1266 = vld [vmem:[%s3 + $0x14] sm:$0xf]
      %v1267 = vld [vmem:[#allocation3 + $0x70] sm:$0xf]
      %v1268 = vld [vmem:[#allocation3 + $0x74] sm:$0xf]
      %s1269 = scalar_lea.vmem %s3, 24
      %v1270 = vld [vmem:[%s1269] sm:$0xf]
      %v1271 = vld [vmem:[%s1269 + $0x4] sm:$0xf]
      %v1272 = vld [vmem:[%s1269 + $0x8] sm:$0xf]
      %v1273 = vld [vmem:[%s1269 + $0xc] sm:$0xf]
      %v1274 = vld [vmem:[%s1269 + $0x10] sm:$0xf]
      %v1275 = vld [vmem:[%s1269 + $0x14] sm:$0xf]
      %v1304 = vunpack.c.l.b16 %v1235
      %v1305 = vunpack.c.l.b16 %v1236
      %v1306 = vunpack.c.l.b16 %v1237
      %v1307 = vunpack.c.l.b16 %v1238
      %v1308 = vunpack.c.l.b16 %v1239
      %v1309 = vunpack.c.l.b16 %v1240
      %v1310 = vunpack.c.l.b16 %v1241
      %v1311 = vunpack.c.l.b16 %v1242
      %v1312 = vunpack.c.l.b16 %v1243
      %v1313 = vunpack.c.l.b16 %v1244
      %v1314 = vunpack.c.l.b16 %v1245
      %v1315 = vunpack.c.l.b16 %v1246
      %v1316 = vunpack.c.l.b16 %v1247
      %v1317 = vunpack.c.l.b16 %v1248
      %v1318 = vunpack.c.l.b16 %v1249
      %v1319 = vunpack.c.l.b16 %v1250
      %v1320 = vunpack.c.l.b16 %v1251
      %v1321 = vunpack.c.l.b16 %v1252
      %v1322 = vunpack.c.l.b16 %v1253
      %v1323 = vunpack.c.l.b16 %v1254
      %v1324 = vunpack.c.l.b16 %v1255
      %v1325 = vunpack.c.l.b16 %v1256
      %v1326 = vunpack.c.l.b16 %v1257
      %v1327 = vunpack.c.l.b16 %v1258
      %v1328 = vunpack.c.l.b16 %v1259
      %v1329 = vunpack.c.l.b16 %v1260
      %v1330 = vunpack.c.l.b16 %v1267
      %v1331 = vunpack.c.l.b16 %v1268
      %v1332 = vpack.c.b16 %v1305, %v1304
      %v1333 = vpack.c.b16 %v1307, %v1306
      %v1334 = vpack.c.b16 %v1309, %v1308
      %v1335 = vpack.c.b16 %v1311, %v1310
      %v1336 = vpack.c.b16 %v1313, %v1312
      %v1337 = vpack.c.b16 %v1315, %v1314
      %v1338 = vpack.c.b16 %v1317, %v1316
      %v1339 = vpack.c.b16 %v1319, %v1318
      %v1340 = vpack.c.b16 %v1321, %v1320
      %v1341 = vpack.c.b16 %v1323, %v1322
      %v1342 = vpack.c.b16 %v1325, %v1324
      %v1343 = vpack.c.b16 %v1327, %v1326
      %v1344 = vpack.c.b16 %v1329, %v1328
      %v1345 = vpack.c.b16 %v1331, %v1330
      %v1352 = vunpack.c.l.b16 %v1270
      %v1353 = vunpack.c.l.b16 %v1271
      %v1354 = vunpack.c.l.b16 %v1272
      %v1355 = vunpack.c.l.b16 %v1273
      %v1356 = vunpack.c.l.b16 %v1274
      %v1357 = vunpack.c.l.b16 %v1275
      %v1358 = vpack.c.b16 %v1353, %v1352
      %v1359 = vpack.c.b16 %v1355, %v1354
      %v1360 = vpack.c.b16 %v1357, %v1356
      %vm1364 = vcmask 392192
      %v1366 = vsel %vm1364, %v1332, 0
      %v1369 = vsel %vm1364, %v1333, 0
      %v1372 = vsel %vm1364, %v1334, 0
      %v1375 = vsel %vm1364, %v1335, 0
      %v1378 = vsel %vm1364, %v1336, 0
      %v1381 = vsel %vm1364, %v1337, 0
      %v1384 = vsel %vm1364, %v1338, 0
      %v1387 = vsel %vm1364, %v1339, 0
      %v1390 = vsel %vm1364, %v1340, 0
      %v1393 = vsel %vm1364, %v1341, 0
      %v1396 = vsel %vm1364, %v1342, 0
      %v1399 = vsel %vm1364, %v1343, 0
      %v1402 = vsel %vm1364, %v1344, 0
      %v1405 = vsel %vm1364, %v1345, 0
      %1407 = vmatprep.subr.bf16.mxu0 0
      %1408 = vmatpush1.bf16.msra.mxu0 0
      %1409 = vmatprep.subr.bf16.mxu0 0
      %1410 = vmatpush1.bf16.msra.mxu0 0
      %1411 = vmatprep.subr.bf16.mxu0 0
      %1412 = vmatpush1.bf16.msra.mxu0 0
      %1413 = vmatprep.subr.bf16.mxu0 0
      %1414 = vmatpush1.bf16.msra.mxu0 0
      %1415 = vmatprep.subr.bf16.mxu0 0
      %1416 = vmatpush1.bf16.msra.mxu0 0
      %1417 = vmatprep.subr.bf16.mxu0 0
      %1418 = vmatpush1.bf16.msra.mxu0 %v1360
      %1419 = vmatprep.subr.bf16.mxu0 0
      %1420 = vmatpush1.bf16.msra.mxu0 %v1359
      %1421 = vmatprep.subr.bf16.mxu0 0
      %1422 = vmatpush1.bf16.msra.mxu0 %v1358
      %1423 = vmatprep.subr.bf16.mxu0 0
      %1424 = vmatpush2.bf16.msra.mxu0 0
      %1425 = vmatprep.subr.bf16.mxu0 0
      %1426 = vmatpush2.bf16.msra.mxu0 0
      %1427 = vmatprep.subr.bf16.mxu0 0
      %1428 = vmatpush2.bf16.msra.mxu0 0
      %1429 = vmatprep.subr.bf16.mxu0 0
      %1430 = vmatpush2.bf16.msra.mxu0 0
      %1431 = vmatprep.subr.bf16.mxu0 0
      %1432 = vmatpush2.bf16.msra.mxu0 0
      %1433 = vmatprep.subr.bf16.mxu0 0
      %1434 = vmatpush2.bf16.msra.mxu0 0
      %1435 = vmatprep.subr.bf16.mxu0 0
      %1436 = vmatpush2.bf16.msra.mxu0 0
      %1437 = vmatprep.subr.bf16.mxu0 0
      %1438 = vmatpush2.bf16.msra.mxu0 0
      %1439 = vmatprep.mubr.bf16.mxu0 0
      %1440 = vmatmul.mubr.bf16.gmra.mxu0 %v1366
      %v1441 = vpop.f32.mrf.mxu0
      %v1442 = vadd.f32 0.0, %v1441
      %v1443 = vpop.f32.mrf.mxu0
      %v1444 = vpop.f32.mrf.mxu0
      %v1445 = vadd.f32 0.0, %v1444
      %v1446 = vpop.f32.mrf.mxu0
      %1447 = vmatprep.mubr.bf16.mxu0 0
      %1448 = vmatmul.mubr.bf16.gmra.mxu0 %v1369
      %v1449 = vpop.f32.mrf.mxu0
      %v1450 = vadd.f32 0.0, %v1449
      %v1451 = vpop.f32.mrf.mxu0
      %v1452 = vpop.f32.mrf.mxu0
      %v1453 = vadd.f32 0.0, %v1452
      %v1454 = vpop.f32.mrf.mxu0
      %1455 = vmatprep.mubr.bf16.mxu0 0
      %1456 = vmatmul.mubr.bf16.gmra.mxu0 %v1372
      %v1457 = vpop.f32.mrf.mxu0
      %v1458 = vadd.f32 0.0, %v1457
      %v1459 = vpop.f32.mrf.mxu0
      %v1460 = vpop.f32.mrf.mxu0
      %v1461 = vadd.f32 0.0, %v1460
      %v1462 = vpop.f32.mrf.mxu0
      %1463 = vmatprep.mubr.bf16.mxu0 0
      %1464 = vmatmul.mubr.bf16.gmra.mxu0 %v1375
      %v1465 = vpop.f32.mrf.mxu0
      %v1466 = vadd.f32 0.0, %v1465
      %v1467 = vpop.f32.mrf.mxu0
      %v1468 = vpop.f32.mrf.mxu0
      %v1469 = vadd.f32 0.0, %v1468
      %v1470 = vpop.f32.mrf.mxu0
      %1471 = vmatprep.mubr.bf16.mxu0 0
      %1472 = vmatmul.mubr.bf16.gmra.mxu0 %v1378
      %v1473 = vpop.f32.mrf.mxu0
      %v1474 = vadd.f32 0.0, %v1473
      %v1475 = vpop.f32.mrf.mxu0
      %v1476 = vpop.f32.mrf.mxu0
      %v1477 = vadd.f32 0.0, %v1476
      %v1478 = vpop.f32.mrf.mxu0
      %1479 = vmatprep.mubr.bf16.mxu0 0
      %1480 = vmatmul.mubr.bf16.gmra.mxu0 %v1381
      %v1481 = vpop.f32.mrf.mxu0
      %v1482 = vadd.f32 0.0, %v1481
      %v1483 = vpop.f32.mrf.mxu0
      %v1484 = vpop.f32.mrf.mxu0
      %v1485 = vadd.f32 0.0, %v1484
      %v1486 = vpop.f32.mrf.mxu0
      %1487 = vmatprep.mubr.bf16.mxu0 0
      %1488 = vmatmul.mubr.bf16.gmra.mxu0 %v1384
      %v1489 = vpop.f32.mrf.mxu0
      %v1490 = vadd.f32 0.0, %v1489
      %v1491 = vpop.f32.mrf.mxu0
      %v1492 = vpop.f32.mrf.mxu0
      %v1493 = vadd.f32 0.0, %v1492
      %v1494 = vpop.f32.mrf.mxu0
      %1495 = vmatprep.mubr.bf16.mxu0 0
      %1496 = vmatmul.mubr.bf16.gmra.mxu0 %v1387
      %v1497 = vpop.f32.mrf.mxu0
      %v1498 = vadd.f32 0.0, %v1497
      %v1499 = vpop.f32.mrf.mxu0
      %v1500 = vpop.f32.mrf.mxu0
      %v1501 = vadd.f32 0.0, %v1500
      %v1502 = vpop.f32.mrf.mxu0
      %1503 = vmatprep.mubr.bf16.mxu0 0
      %1504 = vmatmul.mubr.bf16.gmra.mxu0 %v1390
      %v1505 = vpop.f32.mrf.mxu0
      %v1506 = vadd.f32 0.0, %v1505
      %v1507 = vpop.f32.mrf.mxu0
      %v1508 = vpop.f32.mrf.mxu0
      %v1509 = vadd.f32 0.0, %v1508
      %v1510 = vpop.f32.mrf.mxu0
      %1511 = vmatprep.mubr.bf16.mxu0 0
      %1512 = vmatmul.mubr.bf16.gmra.mxu0 %v1393
      %v1513 = vpop.f32.mrf.mxu0
      %v1514 = vadd.f32 0.0, %v1513
      %v1515 = vpop.f32.mrf.mxu0
      %v1516 = vpop.f32.mrf.mxu0
      %v1517 = vadd.f32 0.0, %v1516
      %v1518 = vpop.f32.mrf.mxu0
      %1519 = vmatprep.mubr.bf16.mxu0 0
      %1520 = vmatmul.mubr.bf16.gmra.mxu0 %v1396
      %v1521 = vpop.f32.mrf.mxu0
      %v1522 = vadd.f32 0.0, %v1521
      %v1523 = vpop.f32.mrf.mxu0
      %v1524 = vpop.f32.mrf.mxu0
      %v1525 = vadd.f32 0.0, %v1524
      %v1526 = vpop.f32.mrf.mxu0
      %1527 = vmatprep.mubr.bf16.mxu0 0
      %1528 = vmatmul.mubr.bf16.gmra.mxu0 %v1399
      %v1529 = vpop.f32.mrf.mxu0
      %v1530 = vadd.f32 0.0, %v1529
      %v1531 = vpop.f32.mrf.mxu0
      %v1532 = vpop.f32.mrf.mxu0
      %v1533 = vadd.f32 0.0, %v1532
      %v1534 = vpop.f32.mrf.mxu0
      %1535 = vmatprep.mubr.bf16.mxu0 0
      %1536 = vmatmul.mubr.bf16.gmra.mxu0 %v1402
      %v1537 = vpop.f32.mrf.mxu0
      %v1538 = vadd.f32 0.0, %v1537
      %v1539 = vpop.f32.mrf.mxu0
      %v1540 = vpop.f32.mrf.mxu0
      %v1541 = vadd.f32 0.0, %v1540
      %v1542 = vpop.f32.mrf.mxu0
      %1543 = vmatprep.mubr.bf16.mxu0 0
      %1544 = vmatmul.mubr.bf16.gmra.mxu0 %v1405
      %v1545 = vpop.f32.mrf.mxu0
      %v1546 = vadd.f32 0.0, %v1545
      %v1547 = vpop.f32.mrf.mxu0
      %v1548 = vpop.f32.mrf.mxu0
      %v1549 = vadd.f32 0.0, %v1548
      %v1550 = vpop.f32.mrf.mxu0
      %1551 = vdwg.mxu0
      %v1554 = vunpack.c.l.b16 %v1233
      %v1555 = vunpack.c.l.b16 %v1234
      %v1556 = vpack.c.b16 %v1555, %v1554
      %v1563 = vunpack.c.l.b16 %v1261
      %v1564 = vunpack.c.l.b16 %v1262
      %v1565 = vunpack.c.l.b16 %v1263
      %v1566 = vunpack.c.l.b16 %v1264
      %v1567 = vunpack.c.l.b16 %v1265
      %v1568 = vunpack.c.l.b16 %v1266
      %v1569 = vpack.c.b16 %v1564, %v1563
      %v1570 = vpack.c.b16 %v1566, %v1565
      %v1571 = vpack.c.b16 %v1568, %v1567
      %v1576 = vsel %vm1364, %v1556, 0
      %1578 = vmatprep.subr.bf16.mxu0 0
      %1579 = vmatpush1.bf16.msra.mxu0 0
      %1580 = vmatprep.subr.bf16.mxu0 0
      %1581 = vmatpush1.bf16.msra.mxu0 0
      %1582 = vmatprep.subr.bf16.mxu0 0
      %1583 = vmatpush1.bf16.msra.mxu0 0
      %1584 = vmatprep.subr.bf16.mxu0 0
      %1585 = vmatpush1.bf16.msra.mxu0 0
      %1586 = vmatprep.subr.bf16.mxu0 0
      %1587 = vmatpush1.bf16.msra.mxu0 0
      %1588 = vmatprep.subr.bf16.mxu0 0
      %1589 = vmatpush1.bf16.msra.mxu0 %v1571
      %1590 = vmatprep.subr.bf16.mxu0 0
      %1591 = vmatpush1.bf16.msra.mxu0 %v1570
      %1592 = vmatprep.subr.bf16.mxu0 0
      %1593 = vmatpush1.bf16.msra.mxu0 %v1569
      %1594 = vmatprep.subr.bf16.mxu0 0
      %1595 = vmatpush2.bf16.msra.mxu0 0
      %1596 = vmatprep.subr.bf16.mxu0 0
      %1597 = vmatpush2.bf16.msra.mxu0 0
      %1598 = vmatprep.subr.bf16.mxu0 0
      %1599 = vmatpush2.bf16.msra.mxu0 0
      %1600 = vmatprep.subr.bf16.mxu0 0
      %1601 = vmatpush2.bf16.msra.mxu0 0
      %1602 = vmatprep.subr.bf16.mxu0 0
      %1603 = vmatpush2.bf16.msra.mxu0 0
      %1604 = vmatprep.subr.bf16.mxu0 0
      %1605 = vmatpush2.bf16.msra.mxu0 0
      %1606 = vmatprep.subr.bf16.mxu0 0
      %1607 = vmatpush2.bf16.msra.mxu0 0
      %1608 = vmatprep.subr.bf16.mxu0 0
      %1609 = vmatpush2.bf16.msra.mxu0 0
      %1610 = vmatprep.mubr.bf16.mxu0 0
      %1611 = vmatmul.mubr.bf16.gmra.mxu0 %v1576
      %v1612 = vpop.f32.mrf.mxu0
      %v1613 = vadd.f32 %v1442, %v1612
      %v1614 = vpop.f32.mrf.mxu0
      %v1615 = vpop.f32.mrf.mxu0
      %v1616 = vadd.f32 %v1445, %v1615
      %v1617 = vpop.f32.mrf.mxu0
      %1618 = vmatprep.mubr.bf16.mxu0 0
      %1619 = vmatmul.mubr.bf16.gmra.mxu0 %v1366
      %v1620 = vpop.f32.mrf.mxu0
      %v1621 = vadd.f32 %v1450, %v1620
      %v1622 = vpop.f32.mrf.mxu0
      %v1623 = vpop.f32.mrf.mxu0
      %v1624 = vadd.f32 %v1453, %v1623
      %v1625 = vpop.f32.mrf.mxu0
      %1626 = vmatprep.mubr.bf16.mxu0 0
      %1627 = vmatmul.mubr.bf16.gmra.mxu0 %v1369
      %v1628 = vpop.f32.mrf.mxu0
      %v1629 = vadd.f32 %v1458, %v1628
      %v1630 = vpop.f32.mrf.mxu0
      %v1631 = vpop.f32.mrf.mxu0
      %v1632 = vadd.f32 %v1461, %v1631
      %v1633 = vpop.f32.mrf.mxu0
      %1634 = vmatprep.mubr.bf16.mxu0 0
      %1635 = vmatmul.mubr.bf16.gmra.mxu0 %v1372
      %v1636 = vpop.f32.mrf.mxu0
      %v1637 = vadd.f32 %v1466, %v1636
      %v1638 = vpop.f32.mrf.mxu0
      %v1639 = vpop.f32.mrf.mxu0
      %v1640 = vadd.f32 %v1469, %v1639
      %v1641 = vpop.f32.mrf.mxu0
      %1642 = vmatprep.mubr.bf16.mxu0 0
      %1643 = vmatmul.mubr.bf16.gmra.mxu0 %v1375
      %v1644 = vpop.f32.mrf.mxu0
      %v1645 = vadd.f32 %v1474, %v1644
      %v1646 = vpop.f32.mrf.mxu0
      %v1647 = vpop.f32.mrf.mxu0
      %v1648 = vadd.f32 %v1477, %v1647
      %v1649 = vpop.f32.mrf.mxu0
      %1650 = vmatprep.mubr.bf16.mxu0 0
      %1651 = vmatmul.mubr.bf16.gmra.mxu0 %v1378
      %v1652 = vpop.f32.mrf.mxu0
      %v1653 = vadd.f32 %v1482, %v1652
      %v1654 = vpop.f32.mrf.mxu0
      %v1655 = vpop.f32.mrf.mxu0
      %v1656 = vadd.f32 %v1485, %v1655
      %v1657 = vpop.f32.mrf.mxu0
      %1658 = vmatprep.mubr.bf16.mxu0 0
      %1659 = vmatmul.mubr.bf16.gmra.mxu0 %v1381
      %v1660 = vpop.f32.mrf.mxu0
      %v1661 = vadd.f32 %v1490, %v1660
      %v1662 = vpop.f32.mrf.mxu0
      %v1663 = vpop.f32.mrf.mxu0
      %v1664 = vadd.f32 %v1493, %v1663
      %v1665 = vpop.f32.mrf.mxu0
      %1666 = vmatprep.mubr.bf16.mxu0 0
      %1667 = vmatmul.mubr.bf16.gmra.mxu0 %v1384
      %v1668 = vpop.f32.mrf.mxu0
      %v1669 = vadd.f32 %v1498, %v1668
      %v1670 = vpop.f32.mrf.mxu0
      %v1671 = vpop.f32.mrf.mxu0
      %v1672 = vadd.f32 %v1501, %v1671
      %v1673 = vpop.f32.mrf.mxu0
      %1674 = vmatprep.mubr.bf16.mxu0 0
      %1675 = vmatmul.mubr.bf16.gmra.mxu0 %v1387
      %v1676 = vpop.f32.mrf.mxu0
      %v1677 = vadd.f32 %v1506, %v1676
      %v1678 = vpop.f32.mrf.mxu0
      %v1679 = vpop.f32.mrf.mxu0
      %v1680 = vadd.f32 %v1509, %v1679
      %v1681 = vpop.f32.mrf.mxu0
      %1682 = vmatprep.mubr.bf16.mxu0 0
      %1683 = vmatmul.mubr.bf16.gmra.mxu0 %v1390
      %v1684 = vpop.f32.mrf.mxu0
      %v1685 = vadd.f32 %v1514, %v1684
      %v1686 = vpop.f32.mrf.mxu0
      %v1687 = vpop.f32.mrf.mxu0
      %v1688 = vadd.f32 %v1517, %v1687
      %v1689 = vpop.f32.mrf.mxu0
      %1690 = vmatprep.mubr.bf16.mxu0 0
      %1691 = vmatmul.mubr.bf16.gmra.mxu0 %v1393
      %v1692 = vpop.f32.mrf.mxu0
      %v1693 = vadd.f32 %v1522, %v1692
      %v1694 = vpop.f32.mrf.mxu0
      %v1695 = vpop.f32.mrf.mxu0
      %v1696 = vadd.f32 %v1525, %v1695
      %v1697 = vpop.f32.mrf.mxu0
      %1698 = vmatprep.mubr.bf16.mxu0 0
      %1699 = vmatmul.mubr.bf16.gmra.mxu0 %v1396
      %v1700 = vpop.f32.mrf.mxu0
      %v1701 = vadd.f32 %v1530, %v1700
      %v1702 = vpop.f32.mrf.mxu0
      %v1703 = vpop.f32.mrf.mxu0
      %v1704 = vadd.f32 %v1533, %v1703
      %v1705 = vpop.f32.mrf.mxu0
      %1706 = vmatprep.mubr.bf16.mxu0 0
      %1707 = vmatmul.mubr.bf16.gmra.mxu0 %v1399
      %v1708 = vpop.f32.mrf.mxu0
      %v1709 = vadd.f32 %v1538, %v1708
      %v1710 = vpop.f32.mrf.mxu0
      %v1711 = vpop.f32.mrf.mxu0
      %v1712 = vadd.f32 %v1541, %v1711
      %v1713 = vpop.f32.mrf.mxu0
      %1714 = vmatprep.mubr.bf16.mxu0 0
      %1715 = vmatmul.mubr.bf16.gmra.mxu0 %v1402
      %v1716 = vpop.f32.mrf.mxu0
      %v1717 = vadd.f32 %v1546, %v1716
      %v1718 = vpop.f32.mrf.mxu0
      %v1719 = vpop.f32.mrf.mxu0
      %v1720 = vadd.f32 %v1549, %v1719
      %v1721 = vpop.f32.mrf.mxu0
      %1722 = vdwg.mxu0
      %v1723 = vld [vmem:[#allocation3 + $0x10] sm:$0xf]
      %v1724 = vld [vmem:[#allocation3 + $0x14] sm:$0xf]
      %v1725 = vld [vmem:[#allocation3 + $0x18] sm:$0xf]
      %v1726 = vld [vmem:[#allocation3 + $0x1c] sm:$0xf]
      %v1727 = vld [vmem:[#allocation3 + $0x20] sm:$0xf]
      %v1728 = vld [vmem:[#allocation3 + $0x24] sm:$0xf]
      %v1729 = vld [vmem:[#allocation3 + $0x28] sm:$0xf]
      %v1730 = vld [vmem:[#allocation3 + $0x2c] sm:$0xf]
      %v1731 = vld [vmem:[#allocation3 + $0x30] sm:$0xf]
      %v1732 = vld [vmem:[#allocation3 + $0x34] sm:$0xf]
      %v1733 = vld [vmem:[#allocation3 + $0x38] sm:$0xf]
      %v1734 = vld [vmem:[#allocation3 + $0x3c] sm:$0xf]
      %v1735 = vld [vmem:[#allocation3 + $0x40] sm:$0xf]
      %v1736 = vld [vmem:[#allocation3 + $0x44] sm:$0xf]
      %v1737 = vld [vmem:[#allocation3 + $0x48] sm:$0xf]
      %v1738 = vld [vmem:[#allocation3 + $0x4c] sm:$0xf]
      %v1739 = vld [vmem:[#allocation3 + $0x50] sm:$0xf]
      %v1740 = vld [vmem:[#allocation3 + $0x54] sm:$0xf]
      %v1741 = vld [vmem:[#allocation3 + $0x58] sm:$0xf]
      %v1742 = vld [vmem:[#allocation3 + $0x5c] sm:$0xf]
      %v1743 = vld [vmem:[#allocation3 + $0x60] sm:$0xf]
      %v1744 = vld [vmem:[#allocation3 + $0x64] sm:$0xf]
      %v1745 = vld [vmem:[#allocation3 + $0x68] sm:$0xf]
      %v1746 = vld [vmem:[#allocation3 + $0x6c] sm:$0xf]
      %v1747 = vld [vmem:[#allocation3 + $0x70] sm:$0xf]
      %v1748 = vld [vmem:[#allocation3 + $0x74] sm:$0xf]
      %v1749 = vld [vmem:[#allocation3 + $0x78] sm:$0xf]
      %v1750 = vld [vmem:[#allocation3 + $0x7c] sm:$0xf]
      %s1751 = scalar_lea.vmem %s3, 48
      %v1752 = vld [vmem:[%s1751] sm:$0xf]
      %v1753 = vld [vmem:[%s1751 + $0x4] sm:$0xf]
      %v1754 = vld [vmem:[%s1751 + $0x8] sm:$0xf]
      %v1755 = vld [vmem:[%s1751 + $0xc] sm:$0xf]
      %v1756 = vld [vmem:[%s1751 + $0x10] sm:$0xf]
      %v1757 = vld [vmem:[%s1751 + $0x14] sm:$0xf]
      %v1786 = vunpack.c.l.b16 %v1723
      %v1787 = vunpack.c.l.b16 %v1724
      %v1788 = vunpack.c.l.b16 %v1725
      %v1789 = vunpack.c.l.b16 %v1726
      %v1790 = vunpack.c.l.b16 %v1727
      %v1791 = vunpack.c.l.b16 %v1728
      %v1792 = vunpack.c.l.b16 %v1729
      %v1793 = vunpack.c.l.b16 %v1730
      %v1794 = vunpack.c.l.b16 %v1731
      %v1795 = vunpack.c.l.b16 %v1732
      %v1796 = vunpack.c.l.b16 %v1733
      %v1797 = vunpack.c.l.b16 %v1734
      %v1798 = vunpack.c.l.b16 %v1735
      %v1799 = vunpack.c.l.b16 %v1736
      %v1800 = vunpack.c.l.b16 %v1737
      %v1801 = vunpack.c.l.b16 %v1738
      %v1802 = vunpack.c.l.b16 %v1739
      %v1803 = vunpack.c.l.b16 %v1740
      %v1804 = vunpack.c.l.b16 %v1741
      %v1805 = vunpack.c.l.b16 %v1742
      %v1806 = vunpack.c.l.b16 %v1743
      %v1807 = vunpack.c.l.b16 %v1744
      %v1808 = vunpack.c.l.b16 %v1745
      %v1809 = vunpack.c.l.b16 %v1746
      %v1810 = vunpack.c.l.b16 %v1747
      %v1811 = vunpack.c.l.b16 %v1748
      %v1812 = vunpack.c.l.b16 %v1749
      %v1813 = vunpack.c.l.b16 %v1750
      %v1814 = vpack.c.b16 %v1787, %v1786
      %v1815 = vpack.c.b16 %v1789, %v1788
      %v1816 = vpack.c.b16 %v1791, %v1790
      %v1817 = vpack.c.b16 %v1793, %v1792
      %v1818 = vpack.c.b16 %v1795, %v1794
      %v1819 = vpack.c.b16 %v1797, %v1796
      %v1820 = vpack.c.b16 %v1799, %v1798
      %v1821 = vpack.c.b16 %v1801, %v1800
      %v1822 = vpack.c.b16 %v1803, %v1802
      %v1823 = vpack.c.b16 %v1805, %v1804
      %v1824 = vpack.c.b16 %v1807, %v1806
      %v1825 = vpack.c.b16 %v1809, %v1808
      %v1826 = vpack.c.b16 %v1811, %v1810
      %v1827 = vpack.c.b16 %v1813, %v1812
      %v1834 = vunpack.c.l.b16 %v1752
      %v1835 = vunpack.c.l.b16 %v1753
      %v1836 = vunpack.c.l.b16 %v1754
      %v1837 = vunpack.c.l.b16 %v1755
      %v1838 = vunpack.c.l.b16 %v1756
      %v1839 = vunpack.c.l.b16 %v1757
      %v1840 = vpack.c.b16 %v1835, %v1834
      %v1841 = vpack.c.b16 %v1837, %v1836
      %v1842 = vpack.c.b16 %v1839, %v1838
      %v1847 = vsel %vm1364, %v1814, 0
      %v1850 = vsel %vm1364, %v1815, 0
      %v1853 = vsel %vm1364, %v1816, 0
      %v1856 = vsel %vm1364, %v1817, 0
      %v1859 = vsel %vm1364, %v1818, 0
      %v1862 = vsel %vm1364, %v1819, 0
      %v1865 = vsel %vm1364, %v1820, 0
      %v1868 = vsel %vm1364, %v1821, 0
      %v1871 = vsel %vm1364, %v1822, 0
      %v1874 = vsel %vm1364, %v1823, 0
      %v1877 = vsel %vm1364, %v1824, 0
      %v1880 = vsel %vm1364, %v1825, 0
      %v1883 = vsel %vm1364, %v1826, 0
      %v1886 = vsel %vm1364, %v1827, 0
      %1888 = vmatprep.subr.bf16.mxu0 0
      %1889 = vmatpush1.bf16.msra.mxu0 0
      %1890 = vmatprep.subr.bf16.mxu0 0
      %1891 = vmatpush1.bf16.msra.mxu0 0
      %1892 = vmatprep.subr.bf16.mxu0 0
      %1893 = vmatpush1.bf16.msra.mxu0 0
      %1894 = vmatprep.subr.bf16.mxu0 0
      %1895 = vmatpush1.bf16.msra.mxu0 0
      %1896 = vmatprep.subr.bf16.mxu0 0
      %1897 = vmatpush1.bf16.msra.mxu0 0
      %1898 = vmatprep.subr.bf16.mxu0 0
      %1899 = vmatpush1.bf16.msra.mxu0 %v1842
      %1900 = vmatprep.subr.bf16.mxu0 0
      %1901 = vmatpush1.bf16.msra.mxu0 %v1841
      %1902 = vmatprep.subr.bf16.mxu0 0
      %1903 = vmatpush1.bf16.msra.mxu0 %v1840
      %1904 = vmatprep.subr.bf16.mxu0 0
      %1905 = vmatpush2.bf16.msra.mxu0 0
      %1906 = vmatprep.subr.bf16.mxu0 0
      %1907 = vmatpush2.bf16.msra.mxu0 0
      %1908 = vmatprep.subr.bf16.mxu0 0
      %1909 = vmatpush2.bf16.msra.mxu0 0
      %1910 = vmatprep.subr.bf16.mxu0 0
      %1911 = vmatpush2.bf16.msra.mxu0 0
      %1912 = vmatprep.subr.bf16.mxu0 0
      %1913 = vmatpush2.bf16.msra.mxu0 0
      %1914 = vmatprep.subr.bf16.mxu0 0
      %1915 = vmatpush2.bf16.msra.mxu0 0
      %1916 = vmatprep.subr.bf16.mxu0 0
      %1917 = vmatpush2.bf16.msra.mxu0 0
      %1918 = vmatprep.subr.bf16.mxu0 0
      %1919 = vmatpush2.bf16.msra.mxu0 0
      %1920 = vmatprep.mubr.bf16.mxu0 0
      %1921 = vmatmul.mubr.bf16.gmra.mxu0 %v1847
      %v1922 = vpop.f32.mrf.mxu0
      %v1923 = vadd.f32 0.0, %v1922
      %v1924 = vpop.f32.mrf.mxu0
      %v1925 = vpop.f32.mrf.mxu0
      %v1926 = vadd.f32 0.0, %v1925
      %v1927 = vpop.f32.mrf.mxu0
      %1928 = vmatprep.mubr.bf16.mxu0 0
      %1929 = vmatmul.mubr.bf16.gmra.mxu0 %v1850
      %v1930 = vpop.f32.mrf.mxu0
      %v1931 = vadd.f32 0.0, %v1930
      %v1932 = vpop.f32.mrf.mxu0
      %v1933 = vpop.f32.mrf.mxu0
      %v1934 = vadd.f32 0.0, %v1933
      %v1935 = vpop.f32.mrf.mxu0
      %1936 = vmatprep.mubr.bf16.mxu0 0
      %1937 = vmatmul.mubr.bf16.gmra.mxu0 %v1853
      %v1938 = vpop.f32.mrf.mxu0
      %v1939 = vadd.f32 0.0, %v1938
      %v1940 = vpop.f32.mrf.mxu0
      %v1941 = vpop.f32.mrf.mxu0
      %v1942 = vadd.f32 0.0, %v1941
      %v1943 = vpop.f32.mrf.mxu0
      %1944 = vmatprep.mubr.bf16.mxu0 0
      %1945 = vmatmul.mubr.bf16.gmra.mxu0 %v1856
      %v1946 = vpop.f32.mrf.mxu0
      %v1947 = vadd.f32 0.0, %v1946
      %v1948 = vpop.f32.mrf.mxu0
      %v1949 = vpop.f32.mrf.mxu0
      %v1950 = vadd.f32 0.0, %v1949
      %v1951 = vpop.f32.mrf.mxu0
      %1952 = vmatprep.mubr.bf16.mxu0 0
      %1953 = vmatmul.mubr.bf16.gmra.mxu0 %v1859
      %v1954 = vpop.f32.mrf.mxu0
      %v1955 = vadd.f32 0.0, %v1954
      %v1956 = vpop.f32.mrf.mxu0
      %v1957 = vpop.f32.mrf.mxu0
      %v1958 = vadd.f32 0.0, %v1957
      %v1959 = vpop.f32.mrf.mxu0
      %1960 = vmatprep.mubr.bf16.mxu0 0
      %1961 = vmatmul.mubr.bf16.gmra.mxu0 %v1862
      %v1962 = vpop.f32.mrf.mxu0
      %v1963 = vadd.f32 0.0, %v1962
      %v1964 = vpop.f32.mrf.mxu0
      %v1965 = vpop.f32.mrf.mxu0
      %v1966 = vadd.f32 0.0, %v1965
      %v1967 = vpop.f32.mrf.mxu0
      %1968 = vmatprep.mubr.bf16.mxu0 0
      %1969 = vmatmul.mubr.bf16.gmra.mxu0 %v1865
      %v1970 = vpop.f32.mrf.mxu0
      %v1971 = vadd.f32 0.0, %v1970
      %v1972 = vpop.f32.mrf.mxu0
      %v1973 = vpop.f32.mrf.mxu0
      %v1974 = vadd.f32 0.0, %v1973
      %v1975 = vpop.f32.mrf.mxu0
      %1976 = vmatprep.mubr.bf16.mxu0 0
      %1977 = vmatmul.mubr.bf16.gmra.mxu0 %v1868
      %v1978 = vpop.f32.mrf.mxu0
      %v1979 = vadd.f32 0.0, %v1978
      %v1980 = vpop.f32.mrf.mxu0
      %v1981 = vpop.f32.mrf.mxu0
      %v1982 = vadd.f32 0.0, %v1981
      %v1983 = vpop.f32.mrf.mxu0
      %1984 = vmatprep.mubr.bf16.mxu0 0
      %1985 = vmatmul.mubr.bf16.gmra.mxu0 %v1871
      %v1986 = vpop.f32.mrf.mxu0
      %v1987 = vadd.f32 0.0, %v1986
      %v1988 = vpop.f32.mrf.mxu0
      %v1989 = vpop.f32.mrf.mxu0
      %v1990 = vadd.f32 0.0, %v1989
      %v1991 = vpop.f32.mrf.mxu0
      %1992 = vmatprep.mubr.bf16.mxu0 0
      %1993 = vmatmul.mubr.bf16.gmra.mxu0 %v1874
      %v1994 = vpop.f32.mrf.mxu0
      %v1995 = vadd.f32 0.0, %v1994
      %v1996 = vpop.f32.mrf.mxu0
      %v1997 = vpop.f32.mrf.mxu0
      %v1998 = vadd.f32 0.0, %v1997
      %v1999 = vpop.f32.mrf.mxu0
      %2000 = vmatprep.mubr.bf16.mxu0 0
      %2001 = vmatmul.mubr.bf16.gmra.mxu0 %v1877
      %v2002 = vpop.f32.mrf.mxu0
      %v2003 = vadd.f32 0.0, %v2002
      %v2004 = vpop.f32.mrf.mxu0
      %v2005 = vpop.f32.mrf.mxu0
      %v2006 = vadd.f32 0.0, %v2005
      %v2007 = vpop.f32.mrf.mxu0
      %2008 = vmatprep.mubr.bf16.mxu0 0
      %2009 = vmatmul.mubr.bf16.gmra.mxu0 %v1880
      %v2010 = vpop.f32.mrf.mxu0
      %v2011 = vadd.f32 0.0, %v2010
      %v2012 = vpop.f32.mrf.mxu0
      %v2013 = vpop.f32.mrf.mxu0
      %v2014 = vadd.f32 0.0, %v2013
      %v2015 = vpop.f32.mrf.mxu0
      %2016 = vmatprep.mubr.bf16.mxu0 0
      %2017 = vmatmul.mubr.bf16.gmra.mxu0 %v1883
      %v2018 = vpop.f32.mrf.mxu0
      %v2019 = vadd.f32 0.0, %v2018
      %v2020 = vpop.f32.mrf.mxu0
      %v2021 = vpop.f32.mrf.mxu0
      %v2022 = vadd.f32 0.0, %v2021
      %v2023 = vpop.f32.mrf.mxu0
      %2024 = vmatprep.mubr.bf16.mxu0 0
      %2025 = vmatmul.mubr.bf16.gmra.mxu0 %v1886
      %v2026 = vpop.f32.mrf.mxu0
      %v2027 = vadd.f32 0.0, %v2026
      %v2028 = vpop.f32.mrf.mxu0
      %v2029 = vpop.f32.mrf.mxu0
      %v2030 = vadd.f32 0.0, %v2029
      %v2031 = vpop.f32.mrf.mxu0
      %2032 = vdwg.mxu0
      %v2033 = vadd.f32 %v1613, %v1923
      %v2034 = vadd.f32 %v1616, %v1926
      %v2035 = vadd.f32 %v1621, %v1931
      %v2036 = vadd.f32 %v1624, %v1934
      %v2037 = vadd.f32 %v1629, %v1939
      %v2038 = vadd.f32 %v1632, %v1942
      %v2039 = vadd.f32 %v1637, %v1947
      %v2040 = vadd.f32 %v1640, %v1950
      %v2041 = vadd.f32 %v1645, %v1955
      %v2042 = vadd.f32 %v1648, %v1958
      %v2043 = vadd.f32 %v1653, %v1963
      %v2044 = vadd.f32 %v1656, %v1966
      %v2045 = vadd.f32 %v1661, %v1971
      %v2046 = vadd.f32 %v1664, %v1974
      %v2047 = vadd.f32 %v1669, %v1979
      %v2048 = vadd.f32 %v1672, %v1982
      %v2049 = vadd.f32 %v1677, %v1987
      %v2050 = vadd.f32 %v1680, %v1990
      %v2051 = vadd.f32 %v1685, %v1995
      %v2052 = vadd.f32 %v1688, %v1998
      %v2053 = vadd.f32 %v1693, %v2003
      %v2054 = vadd.f32 %v1696, %v2006
      %v2055 = vadd.f32 %v1701, %v2011
      %v2056 = vadd.f32 %v1704, %v2014
      %v2057 = vadd.f32 %v1709, %v2019
      %v2058 = vadd.f32 %v1712, %v2022
      %v2059 = vadd.f32 %v1717, %v2027
      %v2060 = vadd.f32 %v1720, %v2030
      %v2061 = vld [vmem:[%s4] sm:$0x1]
      %v2062 = vlaneseq
      %v2063 = vshrl.u32 %v2062, 7
      %v2064 = vsub.s32 0, %v2063
      %v2065 = vrot.slane %v2061, %v2064
      %v2066 = vadd.f32 %v2033, %v2065
      %v2067 = vadd.f32 %v2034, %v2065
      %v2068 = vadd.f32 %v2035, %v2065
      %v2069 = vadd.f32 %v2036, %v2065
      %v2070 = vadd.f32 %v2037, %v2065
      %v2071 = vadd.f32 %v2038, %v2065
      %v2072 = vadd.f32 %v2039, %v2065
      %v2073 = vadd.f32 %v2040, %v2065
      %v2074 = vadd.f32 %v2041, %v2065
      %v2075 = vadd.f32 %v2042, %v2065
      %v2076 = vadd.f32 %v2043, %v2065
      %v2077 = vadd.f32 %v2044, %v2065
      %v2078 = vadd.f32 %v2045, %v2065
      %v2079 = vadd.f32 %v2046, %v2065
      %v2080 = vadd.f32 %v2047, %v2065
      %v2081 = vadd.f32 %v2048, %v2065
      %v2082 = vadd.f32 %v2049, %v2065
      %v2083 = vadd.f32 %v2050, %v2065
      %v2084 = vadd.f32 %v2051, %v2065
      %v2085 = vadd.f32 %v2052, %v2065
      %v2086 = vadd.f32 %v2053, %v2065
      %v2087 = vadd.f32 %v2054, %v2065
      %v2088 = vadd.f32 %v2055, %v2065
      %v2089 = vadd.f32 %v2056, %v2065
      %v2090 = vadd.f32 %v2057, %v2065
      %v2091 = vadd.f32 %v2058, %v2065
      %v2092 = vadd.f32 %v2059, %v2065
      %v2093 = vadd.f32 %v2060, %v2065
      %v2094 = vmax.f32 %v2066, 0.0
      %v2095 = vmax.f32 %v2067, 0.0
      %v2096 = vmax.f32 %v2068, 0.0
      %v2097 = vmax.f32 %v2069, 0.0
      %v2098 = vmax.f32 %v2070, 0.0
      %v2099 = vmax.f32 %v2071, 0.0
      %v2100 = vmax.f32 %v2072, 0.0
      %v2101 = vmax.f32 %v2073, 0.0
      %v2102 = vmax.f32 %v2074, 0.0
      %v2103 = vmax.f32 %v2075, 0.0
      %v2104 = vmax.f32 %v2076, 0.0
      %v2105 = vmax.f32 %v2077, 0.0
      %v2106 = vmax.f32 %v2078, 0.0
      %v2107 = vmax.f32 %v2079, 0.0
      %v2108 = vmax.f32 %v2080, 0.0
      %v2109 = vmax.f32 %v2081, 0.0
      %v2110 = vmax.f32 %v2082, 0.0
      %v2111 = vmax.f32 %v2083, 0.0
      %v2112 = vmax.f32 %v2084, 0.0
      %v2113 = vmax.f32 %v2085, 0.0
      %v2114 = vmax.f32 %v2086, 0.0
      %v2115 = vmax.f32 %v2087, 0.0
      %v2116 = vmax.f32 %v2088, 0.0
      %v2117 = vmax.f32 %v2089, 0.0
      %v2118 = vmax.f32 %v2090, 0.0
      %v2119 = vmax.f32 %v2091, 0.0
      %v2120 = vmax.f32 %v2092, 0.0
      %v2121 = vmax.f32 %v2093, 0.0
      %v2122 = vld [vmem:[%s4 + $0x1] sm:$0x1]
      %v2123 = vlaneseq
      %v2124 = vshrl.u32 %v2123, 7
      %v2125 = vsub.s32 0, %v2124
      %v2126 = vrot.slane %v2122, %v2125
      %v2127 = vmul.f32 %v2094, %v2126
      %v2128 = vmul.f32 %v2095, %v2126
      %v2129 = vmul.f32 %v2096, %v2126
      %v2130 = vmul.f32 %v2097, %v2126
      %v2131 = vmul.f32 %v2098, %v2126
      %v2132 = vmul.f32 %v2099, %v2126
      %v2133 = vmul.f32 %v2100, %v2126
      %v2134 = vmul.f32 %v2101, %v2126
      %v2135 = vmul.f32 %v2102, %v2126
      %v2136 = vmul.f32 %v2103, %v2126
      %v2137 = vmul.f32 %v2104, %v2126
      %v2138 = vmul.f32 %v2105, %v2126
      %v2139 = vmul.f32 %v2106, %v2126
      %v2140 = vmul.f32 %v2107, %v2126
      %v2141 = vmul.f32 %v2108, %v2126
      %v2142 = vmul.f32 %v2109, %v2126
      %v2143 = vmul.f32 %v2110, %v2126
      %v2144 = vmul.f32 %v2111, %v2126
      %v2145 = vmul.f32 %v2112, %v2126
      %v2146 = vmul.f32 %v2113, %v2126
      %v2147 = vmul.f32 %v2114, %v2126
      %v2148 = vmul.f32 %v2115, %v2126
      %v2149 = vmul.f32 %v2116, %v2126
      %v2150 = vmul.f32 %v2117, %v2126
      %v2151 = vmul.f32 %v2118, %v2126
      %v2152 = vmul.f32 %v2119, %v2126
      %v2153 = vmul.f32 %v2120, %v2126
      %v2154 = vmul.f32 %v2121, %v2126
      %v2155 = vld [vmem:[%s4 + $0x2] sm:$0x1]
      %v2156 = vlaneseq
      %v2157 = vshrl.u32 %v2156, 7
      %v2158 = vsub.s32 0, %v2157
      %v2159 = vrot.slane %v2155, %v2158
      %v2160 = vadd.f32 %v2127, %v2159
      %v2161 = vadd.f32 %v2128, %v2159
      %v2162 = vadd.f32 %v2129, %v2159
      %v2163 = vadd.f32 %v2130, %v2159
      %v2164 = vadd.f32 %v2131, %v2159
      %v2165 = vadd.f32 %v2132, %v2159
      %v2166 = vadd.f32 %v2133, %v2159
      %v2167 = vadd.f32 %v2134, %v2159
      %v2168 = vadd.f32 %v2135, %v2159
      %v2169 = vadd.f32 %v2136, %v2159
      %v2170 = vadd.f32 %v2137, %v2159
      %v2171 = vadd.f32 %v2138, %v2159
      %v2172 = vadd.f32 %v2139, %v2159
      %v2173 = vadd.f32 %v2140, %v2159
      %v2174 = vadd.f32 %v2141, %v2159
      %v2175 = vadd.f32 %v2142, %v2159
      %v2176 = vadd.f32 %v2143, %v2159
      %v2177 = vadd.f32 %v2144, %v2159
      %v2178 = vadd.f32 %v2145, %v2159
      %v2179 = vadd.f32 %v2146, %v2159
      %v2180 = vadd.f32 %v2147, %v2159
      %v2181 = vadd.f32 %v2148, %v2159
      %v2182 = vadd.f32 %v2149, %v2159
      %v2183 = vadd.f32 %v2150, %v2159
      %v2184 = vadd.f32 %v2151, %v2159
      %v2185 = vadd.f32 %v2152, %v2159
      %v2186 = vadd.f32 %v2153, %v2159
      %v2187 = vadd.f32 %v2154, %v2159
      %v2188 = vpack.c.bf16 %v2161, %v2160
      %v2189 = vpack.c.bf16 %v2163, %v2162
      %v2190 = vpack.c.bf16 %v2165, %v2164
      %v2191 = vpack.c.bf16 %v2167, %v2166
      %v2192 = vpack.c.bf16 %v2169, %v2168
      %v2193 = vpack.c.bf16 %v2171, %v2170
      %v2194 = vpack.c.bf16 %v2173, %v2172
      %v2195 = vpack.c.bf16 %v2175, %v2174
      %v2196 = vpack.c.bf16 %v2177, %v2176
      %v2197 = vpack.c.bf16 %v2179, %v2178
      %v2198 = vpack.c.bf16 %v2181, %v2180
      %v2199 = vpack.c.bf16 %v2183, %v2182
      %v2200 = vpack.c.bf16 %v2185, %v2184
      %v2201 = vpack.c.bf16 %v2187, %v2186
      %v2216 = vunpack.c.l.b16 %v2188
      %v2217 = vunpack.c.h.b16 %v2188
      %v2218 = vunpack.c.l.b16 %v2189
      %v2219 = vunpack.c.h.b16 %v2189
      %v2220 = vunpack.c.l.b16 %v2190
      %v2221 = vunpack.c.h.b16 %v2190
      %v2222 = vunpack.c.l.b16 %v2191
      %v2223 = vunpack.c.h.b16 %v2191
      %v2224 = vunpack.c.l.b16 %v2192
      %v2225 = vunpack.c.h.b16 %v2192
      %v2226 = vunpack.c.l.b16 %v2193
      %v2227 = vunpack.c.h.b16 %v2193
      %v2228 = vunpack.c.l.b16 %v2194
      %v2229 = vunpack.c.h.b16 %v2194
      %v2230 = vunpack.c.l.b16 %v2195
      %v2231 = vunpack.c.h.b16 %v2195
      %v2232 = vunpack.c.l.b16 %v2196
      %v2233 = vunpack.c.h.b16 %v2196
      %v2234 = vunpack.c.l.b16 %v2197
      %v2235 = vunpack.c.h.b16 %v2197
      %v2236 = vunpack.c.l.b16 %v2198
      %v2237 = vunpack.c.h.b16 %v2198
      %v2238 = vunpack.c.l.b16 %v2199
      %v2239 = vunpack.c.h.b16 %v2199
      %v2240 = vunpack.c.l.b16 %v2200
      %v2241 = vunpack.c.h.b16 %v2200
      %v2242 = vunpack.c.l.b16 %v2201
      %v2243 = vunpack.c.h.b16 %v2201
      %v2244 = vpack.c.b16 %v2216, %v2216
      %v2245 = vpack.c.b16 %v2217, %v2217
      %v2246 = vpack.c.b16 %v2218, %v2218
      %v2247 = vpack.c.b16 %v2219, %v2219
      %v2248 = vpack.c.b16 %v2220, %v2220
      %v2249 = vpack.c.b16 %v2221, %v2221
      %v2250 = vpack.c.b16 %v2222, %v2222
      %v2251 = vpack.c.b16 %v2223, %v2223
      %v2252 = vpack.c.b16 %v2224, %v2224
      %v2253 = vpack.c.b16 %v2225, %v2225
      %v2254 = vpack.c.b16 %v2226, %v2226
      %v2255 = vpack.c.b16 %v2227, %v2227
      %v2256 = vpack.c.b16 %v2228, %v2228
      %v2257 = vpack.c.b16 %v2229, %v2229
      %v2258 = vpack.c.b16 %v2230, %v2230
      %v2259 = vpack.c.b16 %v2231, %v2231
      %v2260 = vpack.c.b16 %v2232, %v2232
      %v2261 = vpack.c.b16 %v2233, %v2233
      %v2262 = vpack.c.b16 %v2234, %v2234
      %v2263 = vpack.c.b16 %v2235, %v2235
      %v2264 = vpack.c.b16 %v2236, %v2236
      %v2265 = vpack.c.b16 %v2237, %v2237
      %v2266 = vpack.c.b16 %v2238, %v2238
      %v2267 = vpack.c.b16 %v2239, %v2239
      %v2268 = vpack.c.b16 %v2240, %v2240
      %v2269 = vpack.c.b16 %v2241, %v2241
      %v2270 = vpack.c.b16 %v2242, %v2242
      %v2271 = vpack.c.b16 %v2243, %v2243
      %2300 = vst [vmem:[%s226] sm:$0xf] %v2244
      %2301 = vst [vmem:[%s226 + $0x4] sm:$0xf] %v2245
      %2302 = vst [vmem:[%s226 + $0x8] sm:$0xf] %v2246
      %2303 = vst [vmem:[%s226 + $0xc] sm:$0xf] %v2247
      %2304 = vst [vmem:[%s226 + $0x10] sm:$0xf] %v2248
      %2305 = vst [vmem:[%s226 + $0x14] sm:$0xf] %v2249
      %2306 = vst [vmem:[%s226 + $0x18] sm:$0xf] %v2250
      %2307 = vst [vmem:[%s226 + $0x1c] sm:$0xf] %v2251
      %2308 = vst [vmem:[%s226 + $0x20] sm:$0xf] %v2252
      %2309 = vst [vmem:[%s226 + $0x24] sm:$0xf] %v2253
      %2310 = vst [vmem:[%s226 + $0x28] sm:$0xf] %v2254
      %2311 = vst [vmem:[%s226 + $0x2c] sm:$0xf] %v2255
      %2312 = vst [vmem:[%s226 + $0x30] sm:$0xf] %v2256
      %2313 = vst [vmem:[%s226 + $0x34] sm:$0xf] %v2257
      %2314 = vst [vmem:[%s226 + $0x38] sm:$0xf] %v2258
      %2315 = vst [vmem:[%s226 + $0x3c] sm:$0xf] %v2259
      %2316 = vst [vmem:[%s226 + $0x40] sm:$0xf] %v2260
      %2317 = vst [vmem:[%s226 + $0x44] sm:$0xf] %v2261
      %2318 = vst [vmem:[%s226 + $0x48] sm:$0xf] %v2262
      %2319 = vst [vmem:[%s226 + $0x4c] sm:$0xf] %v2263
      %2320 = vst [vmem:[%s226 + $0x50] sm:$0xf] %v2264
      %2321 = vst [vmem:[%s226 + $0x54] sm:$0xf] %v2265
      %2322 = vst [vmem:[%s226 + $0x58] sm:$0xf] %v2266
      %2323 = vst [vmem:[%s226 + $0x5c] sm:$0xf] %v2267
      %2324 = vst [vmem:[%s226 + $0x60] sm:$0xf] %v2268
      %2325 = vst [vmem:[%s226 + $0x64] sm:$0xf] %v2269
      %2326 = vst [vmem:[%s226 + $0x68] sm:$0xf] %v2270
      %2327 = vst [vmem:[%s226 + $0x6c] sm:$0xf] %v2271
      %s2328 = smul.u32 28, %s16
      %p2329 = scmp.lt.s32.totalorder %s2328, 55
      %s2330 = scalar_select %p2329, %s2328, 55
      %s2331 = smul.addr %s2330, 4
      %s2332 = scalar_lea.vmem %s5, %s2331
      // Predicated region
      $region41: #{cnn_forward.1} parent=39 // pred_check
        %p2333 = pneg %p144
      $region42: #{cnn_forward.1} parent=39 // pred_check_branch
        %2335 = sbr.rel (%p2333) target = $region44
      $region43: #{cnn_forward.1} parent=39 // pred_region
        %s2336 = smul.u32 28, %s16
      $region44: #{cnn_forward.1} parent=39 // pred_fallthru
        _
    $region40: #{cnn_forward.1} parent=5 // pred_fallthru
      _
    %p2337 = scmp.le.s32.totalorder 2, %s11
    // Predicated region
    $region45: #{cnn_forward.1} parent=5 // pred_check
      %p2338 = pneg %p2337
    $region46: #{cnn_forward.1} parent=5 // pred_check_branch
      %2340 = sbr.rel (%p2338) target = $region48
    $region47: #{cnn_forward.1} parent=5 // pred_region
      %s2341 = ssub.s32 %s11, 2
      // Predicated region
      $region49: #{cnn_forward.1} parent=47 // pred_check
        %p2342 = pneg %p150
      $region50: #{cnn_forward.1} parent=47 // pred_check_branch
        %2344 = sbr.rel (%p2342) target = $region52
      $region51: #{cnn_forward.1} parent=47 // pred_region
        %s2345 = smul.u32 28, %s17
        %p2346 = scmp.lt.s32.totalorder %s2345, 55
        %s2347 = scalar_select %p2346, %s2345, 55
        %s2348 = smul.addr %s2347, 4
        %s2349 = scalar_lea.vmem %s5, %s2348
      $region52: #{cnn_forward.1} parent=47 // pred_fallthru
        _
    $region48: #{cnn_forward.1} parent=5 // pred_fallthru
      _
  $region6: #{cnn_forward.1} parent=0 // loop_footer
    %s15 = sadd.s32 1, %s11
  $region7: #{cnn_forward.1} parent=0 // loop_footer_branch
    %10 = sbr.rel target = $region3
  $region8: #{cnn_forward.1} parent=0 // loop_exit
    _

</llo_original>
